<compile_context>
chip_gen: v7x
topology: tpu7x:2x2x1
jax: 0.10.0
libtpu: 0.0.40
codegen_flags: <defaults>
</compile_context>

<pallas_src>
import functools

import jax
import jax.numpy as jnp
import numpy as np
from jax import lax
from jax.experimental import pallas as pl
from jax.experimental.pallas import tpu as pltpu

EPS = 1e-8              # F.cosine_similarity eps (per-norm clamp, as in the reference)
_INV_EPS = 1.0 / EPS


def _round_up(x, m):
    return -(-x // m) * m


def _pick_divisor_tile(n, prefer, align):
    """Largest divisor of n that is <= prefer and a multiple of `align`; falls back to n."""
    if n <= prefer:
        return n
    for t in range(prefer, 0, -1):
        if n % t == 0 and t % align == 0:
            return t
    return n


def _vmem_estimate_bytes(tq, T, H, mp4):
    """Rough per-grid-step f32 VMEM estimate used for tile sizing and vmem_limit_bytes."""
    P = _round_up(mp4, 128)
    words = (2 * tq * H + 2 * T * H                   # double-buffered premise / hypothesis blocks
             + 2 * (mp4 * H + H * (mp4 + 1))          # double-buffered weight blocks
             + (tq + 2 * T) * (mp4 + 1)               # inverse-norm tables (+ transposed copy)
             + 4 * tq * T                             # cos matrix, live perspective temp, one-hot, iota
             + 2 * H * T                              # hypothesis transpose (f32) + bf16 copy
             + 2 * tq * H                             # mean / max attentive vectors
             + 2 * tq * P)                            # double-buffered (lane-padded) output block
    return 4 * words


def _pick_tq(T, H, mp4, budget_bytes=12 * 2**20):
    """Premise-T tile: largest evenly-dividing, 8-aligned tile whose VMEM estimate fits."""
    tq = _pick_divisor_tile(T, 256, 8)
    while _vmem_estimate_bytes(tq, T, H, mp4) > budget_bytes and tq > 8:
        nxt = _pick_divisor_tile(T, max(tq // 2, 8), 8)
        if nxt >= tq:
            break
        tq = nxt
    # TODO(synk): if T*H alone exceeds the budget, stream the hypothesis T axis with online
    # max / sum accumulators instead of keeping it resident.
    return tq


def _mp_kernel(p_ref, h_ref, w2_ref, wc_ref, o_ref, *, use_bf16):
    """One grid step = one (direction, batch element, premise tile).

    p_ref  : (TQ, H)        premise tile
    h_ref  : (T, H)         full hypothesis (revisit-cached across premise tiles)
    w2_ref : (4mp, H)       squared perspective weights, rows    = [fm | mpm | am | mam]
    wc_ref : (H, 4mp + 1)   squared perspective weights, columns = [fm | mpm | am | mam | ones]
                            (the ones column makes the plain squared norm fall out of the same matmul)
    o_ref  : (TQ, P)        output, lanes = [fm | mpm | am | mam | zero pad], P = round_up(4mp, 128)
                            so the store is lane-dense / unmasked
    """
    f32 = jnp.float32
    p = p_ref[...].astype(f32)                  # (TQ, H)
    h = h_ref[...].astype(f32)                  # (T, H)
    w2 = w2_ref[...].astype(f32)                # (4mp, H)
    wc = wc_ref[...].astype(f32)                # (H, 4mp+1)

    TQ, H = p.shape
    T = h.shape[0]
    mp4 = w2.shape[0]
    mp = mp4 // 4
    P = o_ref.shape[-1]

    def inv_norm(sq):  # 1 / max(sqrt(sq), EPS) == min(rsqrt(sq), 1/EPS); EUP, no divides
        return jnp.minimum(lax.rsqrt(jnp.maximum(sq, 0.0)), _INV_EPS)

    # ---- all inverse norms from ONE (., H) x (H, 4mp+1) matmul per side (f32 operands) ----
    inv_p = inv_norm(jnp.dot(p * p, wc, preferred_element_type=f32))    # (TQ, 4mp+1)
    inv_h = inv_norm(jnp.dot(h * h, wc, preferred_element_type=f32))    # (T,  4mp+1)
    inv_h_t = inv_h.T                                                   # (4mp+1, T) for row bcasts

    # Hypothesis transpose, hoisted once and reused by the mp+1 (., H) x (H, T) contractions.
    ht = h.T                                                            # (H, T)
    mm_dtype = jnp.bfloat16 if use_bf16 else f32
    ht_mm = ht.astype(mm_dtype)

    # ---- cosine matrix (f32 operands: keeps attentive weights and argmax selection stable) ----
    # The premise inverse norm is a positive per-row constant: it cancels in the attentive ratio
    # and never changes the argmax, so only the hypothesis inverse norm is applied.
    cm_h = jnp.dot(p, ht, preferred_element_type=f32) * inv_h_t[mp4:mp4 + 1, :]   # (TQ, T)

    # ---- (1) full matching: every premise step vs. the LAST hypothesis step ----
    h_last = h[T - 1:T, :]                                              # (1, H)
    fm = (jnp.dot(p * h_last, wc[:, 0:mp], preferred_element_type=f32)
          * inv_p[:, 0:mp] * inv_h[T - 1:T, 0:mp])                      # (TQ, mp)

    # ---- (2) max-pooling matching: statically unrolled loop over the mp perspectives ----
    # bf16 MXU operands (f32 accumulation); each (TQ, T) temp is reduced by its max immediately,
    # so nothing of size mp*T is ever materialized; the premise inverse norm is applied after.
    mpm_cols = []
    for m in range(mp):
        wp_m = (p * w2[mp + m:mp + m + 1, :]).astype(mm_dtype)          # (TQ, H)
        d_m = jnp.dot(wp_m, ht_mm, preferred_element_type=f32)          # (TQ, T)
        d_m = d_m * inv_h_t[mp + m:mp + m + 1, :]                       # hypothesis inv norm, pre-max
        mpm_cols.append(jnp.max(d_m, axis=-1, keepdims=True))           # (TQ, 1)
    mpm = jnp.concatenate(mpm_cols, axis=-1) * inv_p[:, mp:2 * mp]      # (TQ, mp)

    # ---- (3) attentive matching: cosine-weighted mean of hypothesis states ----
    # EUP approx reciprocal of the cosine sum: the scale cancels exactly in the final cosine.
    # (As in the reference, the sum can be near zero / negative and has no eps guard.)
    inv_csum = pl.reciprocal(jnp.sum(cm_h, axis=-1, keepdims=True), approx=True)   # (TQ, 1)
    mean_att = jnp.dot(cm_h, h, preferred_element_type=f32) * inv_csum             # (TQ, H)
    am = (jnp.dot(p * mean_att, wc[:, 2 * mp:3 * mp], preferred_element_type=f32)
          * inv_p[:, 2 * mp:3 * mp]
          * inv_norm(jnp.dot(mean_att * mean_att, wc[:, 2 * mp:3 * mp],
                             preferred_element_type=f32)))                         # (TQ, mp)

    # ---- (4) max-attentive matching: hypothesis state with the highest cosine ----
    iota_j = lax.broadcasted_iota(jnp.int32, (TQ, T), 1)
    cmax = jnp.max(cm_h, axis=-1, keepdims=True)
    idx = jnp.min(jnp.where(cm_h >= cmax, iota_j, T), axis=-1, keepdims=True)   # first argmax
    onehot = (iota_j == idx).astype(f32)                                        # (TQ, T), exact 0/1
    max_att = jnp.dot(onehot, h, preferred_element_type=f32)                    # exact row gather
    inv_mam_h = jnp.dot(onehot, inv_h[:, 3 * mp:4 * mp],
                        preferred_element_type=f32)                             # gathered inv norms
    mam = (jnp.dot(p * max_att, wc[:, 3 * mp:4 * mp], preferred_element_type=f32)
           * inv_p[:, 3 * mp:4 * mp] * inv_mam_h)                               # (TQ, mp)

    # ---- lane-dense store: [fm | mpm | am | mam | zero pad to a multiple of 128 lanes] ----
    res = jnp.concatenate([fm, mpm, am, mam], axis=-1)                          # (TQ, 4mp)
    if P > mp4:
        res = jnp.concatenate([res, jnp.zeros((TQ, P - mp4), f32)], axis=-1)
    o_ref[...] = res.astype(o_ref.dtype)


@functools.partial(jax.jit, static_argnames=("use_bf16_matmul", "tile_q"))
def multi_perspective(p_fw, p_bw, h_fw, h_bw, weights, use_bf16_matmul=True, tile_q=None):
    """weights: (8, mp_dim, d_hidden) stacked CustomWeight parameters in the order
    [fm_fw, fm_bw, mpm_fw, mpm_bw, am_fw, am_bw, mam_fw, mam_bw].  Returns (T, B, 8*mp_dim)."""
    T, B, H = p_fw.shape
    n_w, mp, _ = weights.shape
    assert n_w == 8
    mp4 = 4 * mp
    P = _round_up(mp4, 128)          # lane-dense output width (padding sliced off below)

    # ---- layout plumbing stays outside the kernel ----
    pb = jnp.stack([p_fw, p_bw], axis=0).transpose(0, 2, 1, 3)       # (2, B, T, H)
    hb = jnp.stack([h_fw, h_bw], axis=0).transpose(0, 2, 1, 3)       # (2, B, T, H)

    # Group the 8 weights per direction and square them (only w^2 is ever needed).  Two layouts:
    # rows (4mp, H) for weighting the premise in the max-pool loop, and columns (H, 4mp) plus a
    # ones column so the plain squared norms come from the same matmul as the weighted ones.
    w_ds = weights.reshape(4, 2, mp, H).transpose(1, 0, 2, 3)        # (dir, strategy, mp, H)
    w2 = (w_ds * w_ds).reshape(2, mp4, H).astype(jnp.float32)        # (2, 4mp, H)
    wc = jnp.concatenate([w2.transpose(0, 2, 1),
                          jnp.ones((2, H, 1), jnp.float32)], axis=-1)  # (2, H, 4mp+1)

    # ---- tile sizing from a VMEM budget ----
    tq = tile_q if tile_q is not None else _pick_tq(T, H, mp4)
    assert T % tq == 0 and (tq % 8 == 0 or tq == T), (T, tq)
    vmem_limit = int(min(max(2 * _vmem_estimate_bytes(tq, T, H, mp4), 16 * 2**20), 64 * 2**20))

    grid = (2, B, T // tq)   # (direction, batch element, premise tile); all steps independent
    out = pl.pallas_call(
        functools.partial(_mp_kernel, use_bf16=use_bf16_matmul),
        out_shape=jax.ShapeDtypeStruct((2, B, T, P), p_fw.dtype),
        grid_spec=pltpu.PrefetchScalarGridSpec(
            num_scalar_prefetch=0,
            grid=grid,
            in_specs=[
                pl.BlockSpec((None, None, tq, H), lambda d, b, q: (d, b, q, 0)),   # premise tile
                pl.BlockSpec((None, None, T, H), lambda d, b, q: (d, b, 0, 0)),    # hypothesis (revisited)
                pl.BlockSpec((None, mp4, H), lambda d, b, q: (d, 0, 0)),           # w^2 rows
                pl.BlockSpec((None, H, mp4 + 1), lambda d, b, q: (d, 0, 0)),       # w^2 cols + ones
            ],
            out_specs=pl.BlockSpec((None, None, tq, P), lambda d, b, q: (d, b, q, 0)),
        ),
        compiler_params=pltpu.CompilerParams(
            dimension_semantics=("parallel", "parallel", "parallel"),
            vmem_limit_bytes=vmem_limit,
        ),
    )(pb, hb, w2, wc)

    # (2, B, T, P) -> drop lane padding -> (T, B, 4, 2, mp) -> (T, B, 8*mp): exactly the torch
    # concat order [fm_fw, fm_bw, mpm_fw, mpm_bw, am_fw, am_bw, mam_fw, mam_bw].
    out = out[..., :mp4].reshape(2, B, T, 4, mp).transpose(2, 1, 3, 0, 4).reshape(T, B, 8 * mp)
    return out


# ---------------- pure-JAX reference (mirrors the PyTorch code) ----------------
def _ref_forward(p_fw, p_bw, h_fw, h_bw, W):
    def cw(w, x):  # CustomWeight.forward: (T,B,H) -> (T,B,mp,H)
        return x[:, :, None, :] * w[None, None, :, :]

    def cos(a, b):
        dot = jnp.sum(a * b, axis=-1)
        na = jnp.maximum(jnp.sqrt(jnp.sum(a * a, axis=-1)), EPS)
        nb = jnp.maximum(jnp.sqrt(jnp.sum(b * b, axis=-1)), EPS)
        return dot / (na * nb)

    def one_dir(p, h, w_fm, w_mpm, w_am, w_mam):
        T, B, H = p.shape
        fm = cos(cw(w_fm, p), cw(w_fm, h[-1:]))
        mpm = jnp.max(cos(cw(w_mpm, p)[:, None], cw(w_mpm, h)[None]), axis=1)
        cm = cos(p[:, None], h[None])                                    # (T, T, B)
        mean_att = (jnp.sum(cm[..., None] * h[None], axis=1)
                    / jnp.sum(cm, axis=1)[..., None])                    # (T, B, H)
        ma = cos(cw(w_am, p), cw(w_am, mean_att))
        idx = jnp.argmax(cm, axis=1)                                     # (T, B)
        max_att = h[idx, jnp.arange(B)[None, :]]                         # (T, B, H)
        mam = cos(cw(w_mam, p), cw(w_mam, max_att))
        return fm, mpm, ma, mam

    fm_fw, mpm_fw, ma_fw, mam_fw = one_dir(p_fw, h_fw, W[0], W[2], W[4], W[6])
    fm_bw, mpm_bw, ma_bw, mam_bw = one_dir(p_bw, h_bw, W[1], W[3], W[5], W[7])
    return jnp.concatenate(
        [fm_fw, fm_bw, mpm_fw, mpm_bw, ma_fw, ma_bw, mam_fw, mam_bw], axis=-1)


if __name__ == "__main__":
    def make_inputs(T, B, H, MP, seed=0):
        key = jax.random.PRNGKey(seed)
        k1, k2, k3, k4, k5 = jax.random.split(key, 5)
        p_fw = jax.random.normal(k1, (T, B, H), dtype=jnp.float32)
        p_bw = jax.random.normal(k2, (T, B, H), dtype=jnp.float32)
        h_fw = jax.random.normal(k3, (T, B, H), dtype=jnp.float32)
        h_bw = jax.random.normal(k4, (T, B, H), dtype=jnp.float32)
        # Deterministic xavier_uniform-style init for the 8 (1, mp, H) CustomWeight tensors:
        # fan_in = mp*H, fan_out = H  ->  bound = sqrt(6 / (mp*H + H))
        bound = (6.0 / (MP * H + H)) ** 0.5
        W = jax.random.uniform(k5, (8, MP, H), dtype=jnp.float32, minval=-bound, maxval=bound)
        return p_fw, p_bw, h_fw, h_bw, W

    # Case 1: module-sized smoke test (time_steps=8, batch=2, d_hidden=32, mp_dim=4).
    T, B, H, MP = 8, 2, 32, 4
    args = make_inputs(T, B, H, MP, seed=0)
    ref = _ref_forward(*args)

    # f32 MXU path: tight tolerance (differences are only MXU-vs-VPU f32 rounding).
    out_f32 = jax.block_until_ready(multi_perspective(*args, use_bf16_matmul=False))
    assert out_f32.shape == (T, B, 8 * MP)
    np.testing.assert_allclose(np.asarray(out_f32), np.asarray(ref), rtol=2e-3, atol=2e-3)

    # Default (bf16 MXU operands for the max-pool contractions): outputs are cosines in [-1, 1];
    # bf16 operand rounding bounds the absolute error by ~2^-7, so 1.5e-2 still validates the
    # algorithm (ordering / gather / layout bugs produce O(0.1 - 1) errors).  The argmax path
    # stays f32, so max-attentive selection matches the reference.
    out = jax.block_until_ready(multi_perspective(*args))
    np.testing.assert_allclose(np.asarray(out), np.asarray(ref), rtol=0.0, atol=1.5e-2)

    # Case 2: exercises the (direction, batch, premise-tile) grid: odd batch count and two
    # premise tiles of 8 (grid = (2, 3, 2)).
    T2, B2, H2, MP2 = 16, 3, 32, 4
    args2 = make_inputs(T2, B2, H2, MP2, seed=1)
    ref2 = _ref_forward(*args2)
    out2 = jax.block_until_ready(multi_perspective(*args2, use_bf16_matmul=False, tile_q=8))
    assert out2.shape == (T2, B2, 8 * MP2)
    np.testing.assert_allclose(np.asarray(out2), np.asarray(ref2), rtol=2e-3, atol=2e-3)

    print("KERNEL_OK")
</pallas_src>

<mosaic_0001>
module attributes {stable_mosaic.version = 11 : i64} {
  func.func @_mp_kernel(%arg0: i32, %arg1: i32, %arg2: i32, %arg3: memref<1x1x8x32xf32, #tpu.memory_space<vmem>>, %arg4: memref<1x1x8x32xf32, #tpu.memory_space<vmem>>, %arg5: memref<1x16x32xf32, #tpu.memory_space<vmem>>, %arg6: memref<1x32x17xf32, #tpu.memory_space<vmem>>, %arg7: memref<1x1x8x128xf32, #tpu.memory_space<vmem>>) attributes {dimension_semantics = [#tpu.dimension_semantics<parallel>, #tpu.dimension_semantics<parallel>, #tpu.dimension_semantics<parallel>], iteration_bounds = array<i64: 2, 2, 1>, scalar_prefetch = 0 : i64, scratch_operands = 0 : i64, tpu.core_type = #tpu.core_type<tc>, window_params = [{transform_indices = @transform_0, window_bounds = array<i64: 1, 1, 8, 32>}, {transform_indices = @transform_1, window_bounds = array<i64: 1, 1, 8, 32>}, {transform_indices = @transform_2, window_bounds = array<i64: 1, 16, 32>}, {transform_indices = @transform_3, window_bounds = array<i64: 1, 32, 17>}, {transform_indices = @transform_4, window_bounds = array<i64: 1, 1, 8, 128>}]} {
    %c0 = arith.constant 0 : index
    %c0_0 = arith.constant 0 : index
    %c0_1 = arith.constant 0 : index
    %c0_2 = arith.constant 0 : index
    %0 = vector.load %arg3[%c0, %c0_0, %c0_1, %c0_2] : memref<1x1x8x32xf32, #tpu.memory_space<vmem>>, vector<1x1x8x32xf32>
    %1 = vector.shape_cast %0 : vector<1x1x8x32xf32> to vector<8x32xf32>
    %c0_3 = arith.constant 0 : index
    %c0_4 = arith.constant 0 : index
    %c0_5 = arith.constant 0 : index
    %c0_6 = arith.constant 0 : index
    %2 = vector.load %arg4[%c0_3, %c0_4, %c0_5, %c0_6] : memref<1x1x8x32xf32, #tpu.memory_space<vmem>>, vector<1x1x8x32xf32>
    %3 = vector.shape_cast %2 : vector<1x1x8x32xf32> to vector<8x32xf32>
    %c0_7 = arith.constant 0 : index
    %c0_8 = arith.constant 0 : index
    %c0_9 = arith.constant 0 : index
    %4 = vector.load %arg5[%c0_7, %c0_8, %c0_9] : memref<1x16x32xf32, #tpu.memory_space<vmem>>, vector<1x16x32xf32>
    %5 = vector.shape_cast %4 : vector<1x16x32xf32> to vector<16x32xf32>
    %c0_10 = arith.constant 0 : index
    %c0_11 = arith.constant 0 : index
    %c0_12 = arith.constant 0 : index
    %6 = vector.load %arg6[%c0_10, %c0_11, %c0_12] : memref<1x32x17xf32, #tpu.memory_space<vmem>>, vector<1x32x17xf32>
    %7 = vector.shape_cast %6 : vector<1x32x17xf32> to vector<32x17xf32>
    %8 = arith.mulf %1, %1 : vector<8x32xf32>
    %cst = arith.constant dense<0.000000e+00> : vector<8x17xf32>
    %9 = tpu.matmul %8, %7, %cst {dimension_numbers = #tpu.dot_dimension_numbers<[1], [0], [0], [1], [0, 0, 1, 1], [], []>} : vector<8x32xf32>, vector<32x17xf32>, vector<8x17xf32> -> vector<8x17xf32>
    %cst_13 = arith.constant 0.000000e+00 : f32
    %10 = vector.broadcast %cst_13 : f32 to vector<8x17xf32>
    %11 = arith.maximumf %9, %10 : vector<8x17xf32>
    %12 = math.rsqrt %11 : vector<8x17xf32>
    %cst_14 = arith.constant 1.000000e+08 : f32
    %13 = vector.broadcast %cst_14 : f32 to vector<8x17xf32>
    %14 = arith.minimumf %12, %13 : vector<8x17xf32>
    %15 = arith.mulf %3, %3 : vector<8x32xf32>
    %cst_15 = arith.constant dense<0.000000e+00> : vector<8x17xf32>
    %16 = tpu.matmul %15, %7, %cst_15 {dimension_numbers = #tpu.dot_dimension_numbers<[1], [0], [0], [1], [0, 0, 1, 1], [], []>} : vector<8x32xf32>, vector<32x17xf32>, vector<8x17xf32> -> vector<8x17xf32>
    %cst_16 = arith.constant 0.000000e+00 : f32
    %17 = vector.broadcast %cst_16 : f32 to vector<8x17xf32>
    %18 = arith.maximumf %16, %17 : vector<8x17xf32>
    %19 = math.rsqrt %18 : vector<8x17xf32>
    %cst_17 = arith.constant 1.000000e+08 : f32
    %20 = vector.broadcast %cst_17 : f32 to vector<8x17xf32>
    %21 = arith.minimumf %19, %20 : vector<8x17xf32>
    %22 = tpu.transpose %21, [1, 0] : vector<8x17xf32> -> vector<17x8xf32>
    %23 = tpu.transpose %3, [1, 0] : vector<8x32xf32> -> vector<32x8xf32>
    %cst_18 = arith.constant dense<0.000000e+00> : vector<8x8xf32>
    %24 = tpu.matmul %1, %23, %cst_18 {dimension_numbers = #tpu.dot_dimension_numbers<[1], [0], [0], [1], [0, 0, 1, 1], [], []>} : vector<8x32xf32>, vector<32x8xf32>, vector<8x8xf32> -> vector<8x8xf32>
    %25 = vector.extract_strided_slice %22 {offsets = [16, 0], sizes = [1, 8], strides = [1, 1]} : vector<17x8xf32> to vector<1x8xf32>
    %26 = vector.broadcast %25 : vector<1x8xf32> to vector<8x8xf32>
    %27 = arith.mulf %24, %26 : vector<8x8xf32>
    %28 = vector.extract_strided_slice %3 {offsets = [7, 0], sizes = [1, 32], strides = [1, 1]} : vector<8x32xf32> to vector<1x32xf32>
    %29 = vector.broadcast %28 : vector<1x32xf32> to vector<8x32xf32>
    %30 = arith.mulf %1, %29 : vector<8x32xf32>
    %31 = vector.extract_strided_slice %7 {offsets = [0, 0], sizes = [32, 4], strides = [1, 1]} : vector<32x17xf32> to vector<32x4xf32>
    %cst_19 = arith.constant dense<0.000000e+00> : vector<8x4xf32>
    %32 = tpu.matmul %30, %31, %cst_19 {dimension_numbers = #tpu.dot_dimension_numbers<[1], [0], [0], [1], [0, 0, 1, 1], [], []>} : vector<8x32xf32>, vector<32x4xf32>, vector<8x4xf32> -> vector<8x4xf32>
    %33 = vector.extract_strided_slice %14 {offsets = [0, 0], sizes = [8, 4], strides = [1, 1]} : vector<8x17xf32> to vector<8x4xf32>
    %34 = arith.mulf %32, %33 : vector<8x4xf32>
    %35 = vector.extract_strided_slice %21 {offsets = [7, 0], sizes = [1, 4], strides = [1, 1]} : vector<8x17xf32> to vector<1x4xf32>
    %36 = vector.broadcast %35 : vector<1x4xf32> to vector<8x4xf32>
    %37 = arith.mulf %34, %36 : vector<8x4xf32>
    %38 = vector.extract_strided_slice %5 {offsets = [4, 0], sizes = [1, 32], strides = [1, 1]} : vector<16x32xf32> to vector<1x32xf32>
    %39 = vector.broadcast %38 : vector<1x32xf32> to vector<8x32xf32>
    %40 = arith.mulf %1, %39 : vector<8x32xf32>
    %cst_20 = arith.constant dense<0.000000e+00> : vector<8x8xf32>
    %41 = tpu.matmul %40, %23, %cst_20 {dimension_numbers = #tpu.dot_dimension_numbers<[1], [0], [0], [1], [0, 0, 1, 1], [], []>} : vector<8x32xf32>, vector<32x8xf32>, vector<8x8xf32> -> vector<8x8xf32>
    %42 = vector.extract_strided_slice %22 {offsets = [4, 0], sizes = [1, 8], strides = [1, 1]} : vector<17x8xf32> to vector<1x8xf32>
    %43 = vector.broadcast %42 : vector<1x8xf32> to vector<8x8xf32>
    %44 = arith.mulf %41, %43 : vector<8x8xf32>
    %cst_21 = arith.constant dense<0xFF800000> : vector<8xf32>
    %45 = vector.multi_reduction <maximumf>, %44, %cst_21 [1] : vector<8x8xf32> to vector<8xf32>
    %46 = vector.shape_cast %45 : vector<8xf32> to vector<8x1xf32>
    %47 = vector.extract_strided_slice %5 {offsets = [5, 0], sizes = [1, 32], strides = [1, 1]} : vector<16x32xf32> to vector<1x32xf32>
    %48 = vector.broadcast %47 : vector<1x32xf32> to vector<8x32xf32>
    %49 = arith.mulf %1, %48 : vector<8x32xf32>
    %cst_22 = arith.constant dense<0.000000e+00> : vector<8x8xf32>
    %50 = tpu.matmul %49, %23, %cst_22 {dimension_numbers = #tpu.dot_dimension_numbers<[1], [0], [0], [1], [0, 0, 1, 1], [], []>} : vector<8x32xf32>, vector<32x8xf32>, vector<8x8xf32> -> vector<8x8xf32>
    %51 = vector.extract_strided_slice %22 {offsets = [5, 0], sizes = [1, 8], strides = [1, 1]} : vector<17x8xf32> to vector<1x8xf32>
    %52 = vector.broadcast %51 : vector<1x8xf32> to vector<8x8xf32>
    %53 = arith.mulf %50, %52 : vector<8x8xf32>
    %cst_23 = arith.constant dense<0xFF800000> : vector<8xf32>
    %54 = vector.multi_reduction <maximumf>, %53, %cst_23 [1] : vector<8x8xf32> to vector<8xf32>
    %55 = vector.shape_cast %54 : vector<8xf32> to vector<8x1xf32>
    %56 = vector.extract_strided_slice %5 {offsets = [6, 0], sizes = [1, 32], strides = [1, 1]} : vector<16x32xf32> to vector<1x32xf32>
    %57 = vector.broadcast %56 : vector<1x32xf32> to vector<8x32xf32>
    %58 = arith.mulf %1, %57 : vector<8x32xf32>
    %cst_24 = arith.constant dense<0.000000e+00> : vector<8x8xf32>
    %59 = tpu.matmul %58, %23, %cst_24 {dimension_numbers = #tpu.dot_dimension_numbers<[1], [0], [0], [1], [0, 0, 1, 1], [], []>} : vector<8x32xf32>, vector<32x8xf32>, vector<8x8xf32> -> vector<8x8xf32>
    %60 = vector.extract_strided_slice %22 {offsets = [6, 0], sizes = [1, 8], strides = [1, 1]} : vector<17x8xf32> to vector<1x8xf32>
    %61 = vector.broadcast %60 : vector<1x8xf32> to vector<8x8xf32>
    %62 = arith.mulf %59, %61 : vector<8x8xf32>
    %cst_25 = arith.constant dense<0xFF800000> : vector<8xf32>
    %63 = vector.multi_reduction <maximumf>, %62, %cst_25 [1] : vector<8x8xf32> to vector<8xf32>
    %64 = vector.shape_cast %63 : vector<8xf32> to vector<8x1xf32>
    %65 = vector.extract_strided_slice %5 {offsets = [7, 0], sizes = [1, 32], strides = [1, 1]} : vector<16x32xf32> to vector<1x32xf32>
    %66 = vector.broadcast %65 : vector<1x32xf32> to vector<8x32xf32>
    %67 = arith.mulf %1, %66 : vector<8x32xf32>
    %cst_26 = arith.constant dense<0.000000e+00> : vector<8x8xf32>
    %68 = tpu.matmul %67, %23, %cst_26 {dimension_numbers = #tpu.dot_dimension_numbers<[1], [0], [0], [1], [0, 0, 1, 1], [], []>} : vector<8x32xf32>, vector<32x8xf32>, vector<8x8xf32> -> vector<8x8xf32>
    %69 = vector.extract_strided_slice %22 {offsets = [7, 0], sizes = [1, 8], strides = [1, 1]} : vector<17x8xf32> to vector<1x8xf32>
    %70 = vector.broadcast %69 : vector<1x8xf32> to vector<8x8xf32>
    %71 = arith.mulf %68, %70 : vector<8x8xf32>
    %cst_27 = arith.constant dense<0xFF800000> : vector<8xf32>
    %72 = vector.multi_reduction <maximumf>, %71, %cst_27 [1] : vector<8x8xf32> to vector<8xf32>
    %73 = vector.shape_cast %72 : vector<8xf32> to vector<8x1xf32>
    %74 = tpu.concatenate %46, %55, %64, %73 in 1 : vector<8x1xf32>, vector<8x1xf32>, vector<8x1xf32>, vector<8x1xf32> -> vector<8x4xf32>
    %75 = vector.extract_strided_slice %14 {offsets = [0, 4], sizes = [8, 4], strides = [1, 1]} : vector<8x17xf32> to vector<8x4xf32>
    %76 = arith.mulf %74, %75 : vector<8x4xf32>
    %cst_28 = arith.constant dense<0.000000e+00> : vector<8xf32>
    %77 = vector.multi_reduction <add>, %27, %cst_28 [1] : vector<8x8xf32> to vector<8xf32>
    %78 = vector.shape_cast %77 : vector<8xf32> to vector<8x1xf32>
    %79 = tpu.reciprocal %78 {approx = true} : vector<8x1xf32> -> vector<8x1xf32>
    %cst_29 = arith.constant dense<0.000000e+00> : vector<8x32xf32>
    %80 = tpu.matmul %27, %3, %cst_29 {dimension_numbers = #tpu.dot_dimension_numbers<[1], [0], [0], [1], [0, 0, 1, 1], [], []>} : vector<8x8xf32>, vector<8x32xf32>, vector<8x32xf32> -> vector<8x32xf32>
    %81 = vector.broadcast %79 : vector<8x1xf32> to vector<8x32xf32>
    %82 = arith.mulf %80, %81 : vector<8x32xf32>
    %83 = arith.mulf %1, %82 : vector<8x32xf32>
    %84 = vector.extract_strided_slice %7 {offsets = [0, 8], sizes = [32, 4], strides = [1, 1]} : vector<32x17xf32> to vector<32x4xf32>
    %cst_30 = arith.constant dense<0.000000e+00> : vector<8x4xf32>
    %85 = tpu.matmul %83, %84, %cst_30 {dimension_numbers = #tpu.dot_dimension_numbers<[1], [0], [0], [1], [0, 0, 1, 1], [], []>} : vector<8x32xf32>, vector<32x4xf32>, vector<8x4xf32> -> vector<8x4xf32>
    %86 = vector.extract_strided_slice %14 {offsets = [0, 8], sizes = [8, 4], strides = [1, 1]} : vector<8x17xf32> to vector<8x4xf32>
    %87 = arith.mulf %85, %86 : vector<8x4xf32>
    %88 = arith.mulf %82, %82 : vector<8x32xf32>
    %89 = vector.extract_strided_slice %7 {offsets = [0, 8], sizes = [32, 4], strides = [1, 1]} : vector<32x17xf32> to vector<32x4xf32>
    %cst_31 = arith.constant dense<0.000000e+00> : vector<8x4xf32>
    %90 = tpu.matmul %88, %89, %cst_31 {dimension_numbers = #tpu.dot_dimension_numbers<[1], [0], [0], [1], [0, 0, 1, 1], [], []>} : vector<8x32xf32>, vector<32x4xf32>, vector<8x4xf32> -> vector<8x4xf32>
    %cst_32 = arith.constant 0.000000e+00 : f32
    %91 = vector.broadcast %cst_32 : f32 to vector<8x4xf32>
    %92 = arith.maximumf %90, %91 : vector<8x4xf32>
    %93 = math.rsqrt %92 : vector<8x4xf32>
    %cst_33 = arith.constant 1.000000e+08 : f32
    %94 = vector.broadcast %cst_33 : f32 to vector<8x4xf32>
    %95 = arith.minimumf %93, %94 : vector<8x4xf32>
    %96 = arith.mulf %87, %95 : vector<8x4xf32>
    %97 = tpu.iota {dimensions = array<i32: 1>} : vector<8x8xi32>
    %cst_34 = arith.constant dense<0xFF800000> : vector<8xf32>
    %98 = vector.multi_reduction <maximumf>, %27, %cst_34 [1] : vector<8x8xf32> to vector<8xf32>
    %99 = vector.shape_cast %98 : vector<8xf32> to vector<8x1xf32>
    %100 = vector.broadcast %99 : vector<8x1xf32> to vector<8x8xf32>
    %101 = arith.cmpf oge, %27, %100 : vector<8x8xf32>
    %c8_i32 = arith.constant 8 : i32
    %102 = vector.broadcast %c8_i32 : i32 to vector<8x8xi32>
    %103 = arith.select %101, %97, %102 : vector<8x8xi1>, vector<8x8xi32>
    %cst_35 = arith.constant dense<2147483647> : vector<8xi32>
    %104 = vector.multi_reduction <minsi>, %103, %cst_35 [1] : vector<8x8xi32> to vector<8xi32>
    %105 = vector.shape_cast %104 : vector<8xi32> to vector<8x1xi32>
    %106 = vector.broadcast %105 : vector<8x1xi32> to vector<8x8xi32>
    %107 = arith.cmpi eq, %97, %106 : vector<8x8xi32>
    %108 = arith.extui %107 : vector<8x8xi1> to vector<8x8xi32>
    %109 = arith.sitofp %108 : vector<8x8xi32> to vector<8x8xf32>
    %cst_36 = arith.constant dense<0.000000e+00> : vector<8x32xf32>
    %110 = tpu.matmul %109, %3, %cst_36 {dimension_numbers = #tpu.dot_dimension_numbers<[1], [0], [0], [1], [0, 0, 1, 1], [], []>} : vector<8x8xf32>, vector<8x32xf32>, vector<8x32xf32> -> vector<8x32xf32>
    %111 = vector.extract_strided_slice %21 {offsets = [0, 12], sizes = [8, 4], strides = [1, 1]} : vector<8x17xf32> to vector<8x4xf32>
    %cst_37 = arith.constant dense<0.000000e+00> : vector<8x4xf32>
    %112 = tpu.matmul %109, %111, %cst_37 {dimension_numbers = #tpu.dot_dimension_numbers<[1], [0], [0], [1], [0, 0, 1, 1], [], []>} : vector<8x8xf32>, vector<8x4xf32>, vector<8x4xf32> -> vector<8x4xf32>
    %113 = arith.mulf %1, %110 : vector<8x32xf32>
    %114 = vector.extract_strided_slice %7 {offsets = [0, 12], sizes = [32, 4], strides = [1, 1]} : vector<32x17xf32> to vector<32x4xf32>
    %cst_38 = arith.constant dense<0.000000e+00> : vector<8x4xf32>
    %115 = tpu.matmul %113, %114, %cst_38 {dimension_numbers = #tpu.dot_dimension_numbers<[1], [0], [0], [1], [0, 0, 1, 1], [], []>} : vector<8x32xf32>, vector<32x4xf32>, vector<8x4xf32> -> vector<8x4xf32>
    %116 = vector.extract_strided_slice %14 {offsets = [0, 12], sizes = [8, 4], strides = [1, 1]} : vector<8x17xf32> to vector<8x4xf32>
    %117 = arith.mulf %115, %116 : vector<8x4xf32>
    %118 = arith.mulf %117, %112 : vector<8x4xf32>
    %119 = tpu.concatenate %37, %76, %96, %118 in 1 : vector<8x4xf32>, vector<8x4xf32>, vector<8x4xf32>, vector<8x4xf32> -> vector<8x16xf32>
    %cst_39 = arith.constant 0.000000e+00 : f32
    %120 = vector.broadcast %cst_39 : f32 to vector<8x112xf32>
    %121 = tpu.concatenate %119, %120 in 1 : vector<8x16xf32>, vector<8x112xf32> -> vector<8x128xf32>
    %c0_40 = arith.constant 0 : index
    %c0_41 = arith.constant 0 : index
    %c0_42 = arith.constant 0 : index
    %c0_43 = arith.constant 0 : index
    %122 = vector.load %arg7[%c0_40, %c0_41, %c0_42, %c0_43] : memref<1x1x8x128xf32, #tpu.memory_space<vmem>>, vector<1x1x8x128xf32>
    %123 = vector.shape_cast %122 : vector<1x1x8x128xf32> to vector<8x128xf32>
    %124 = vector.shape_cast %121 : vector<8x128xf32> to vector<1x1x8x128xf32>
    tpu.vector_store %arg7[%c0_40, %c0_41, %c0_42, %c0_43], %124 {strides = array<i32>} : memref<1x1x8x128xf32, #tpu.memory_space<vmem>>, vector<1x1x8x128xf32>,
    return
  }
  func.func @transform_0(%arg0: i32, %arg1: i32, %arg2: i32) -> (i32, i32, i32, i32) {
    %c0_i32 = arith.constant 0 : i32
    %c0_i32_0 = arith.constant 0 : i32
    return %arg0, %arg1, %arg2, %c0_i32 : i32, i32, i32, i32
  }
  func.func @transform_1(%arg0: i32, %arg1: i32, %arg2: i32) -> (i32, i32, i32, i32) {
    %c0_i32 = arith.constant 0 : i32
    %c0_i32_0 = arith.constant 0 : i32
    %c0_i32_1 = arith.constant 0 : i32
    return %arg0, %arg1, %c0_i32, %c0_i32_0 : i32, i32, i32, i32
  }
  func.func @transform_2(%arg0: i32, %arg1: i32, %arg2: i32) -> (i32, i32, i32) {
    %c0_i32 = arith.constant 0 : i32
    %c0_i32_0 = arith.constant 0 : i32
    %c0_i32_1 = arith.constant 0 : i32
    return %arg0, %c0_i32, %c0_i32_0 : i32, i32, i32
  }
  func.func @transform_3(%arg0: i32, %arg1: i32, %arg2: i32) -> (i32, i32, i32) {
    %c0_i32 = arith.constant 0 : i32
    %c0_i32_0 = arith.constant 0 : i32
    %c0_i32_1 = arith.constant 0 : i32
    return %arg0, %c0_i32, %c0_i32_0 : i32, i32, i32
  }
  func.func @transform_4(%arg0: i32, %arg1: i32, %arg2: i32) -> (i32, i32, i32, i32) {
    %c0_i32 = arith.constant 0 : i32
    %c0_i32_0 = arith.constant 0 : i32
    return %arg0, %arg1, %arg2, %c0_i32 : i32, i32, i32, i32
  }
}

</mosaic_0001>

<llo_original>
// kernel: mul.2
$region0: #{mul.2}
  #allocation4 [shape = 's32[1]{0}', space=sflag, size = 0x4, scoped, tag = 'scoped memory for mul.2']
  %s0 = inlined_call_operand.hbm [shape: f32[8,4,32], index: 0, kind: input, shape index: {}, may-alias: {0,1}]
  %s1 = inlined_call_operand.hbm [shape: f32[8,4,32], index: 1, kind: input, shape index: {}, may-alias: {0,1}]
  %s2 = inlined_call_operand.vmem [shape: f32[8,4,32], index: 2, kind: output, shape index: {}]
  $region1: #{mul.2} parent=0
    #allocation0 [shape = 'u8[16384]{0}', space=vmem, size = 0x4000, scoped, tag = 'operand span for operand 0, may alias with: [0, 1]']
    #allocation1 [shape = 's32[1]{0}', space=sflag, size = 0x4, scoped, tag = 'scoped memory for mul.2']
    #allocation2 [shape = 'u8[16384]{0}', space=vmem, size = 0x4000, scoped, tag = 'operand span for operand 1, may alias with: [0, 1]']
    #allocation3 [shape = 's32[1]{0}', space=sflag, size = 0x4, scoped, tag = 'scoped memory for mul.2']
    %3 = vsyncpa [#allocation1], 0
    %4 = vsyncpa [#allocation3], 0
    %s6 = ssub.s32 512, 512
    %7 = vsyncadd [#allocation1], %s6
    %s8 = sshll.u32 [#allocation0], 4
    %s9 = int_to_ptr.vmem [resolvable:$true] %s8
    %14 = dma.hbm_to_vmem [thread:$0]  %s0, 512, %s9, [#allocation1], 64, 64, 4
    %s16 = ssub.s32 512, 512
    %17 = vsyncadd [#allocation3], %s16
    %s18 = sshll.u32 [#allocation2], 4
    %s19 = int_to_ptr.vmem [resolvable:$true] %s18
    %24 = dma.hbm_to_vmem [thread:$0]  %s1, 512, %s19, [#allocation3], 64, 64, 4
    %25 = dma.done [#allocation1], 512
    %26 = dma.done [#allocation3], 512
    %v27 = vld [vmem:[#allocation0] sm:$0xf]
    %v28 = vld [vmem:[#allocation2] sm:$0xf]
    %29 = xla_tuple %v27, %v28
    %30 = xla_tuple %29
    %v31 = vmul.f32 %v27, %v28
    %32 = xla_tuple %v31
    %33 = vst [vmem:[%s2] sm:$0xf] %v31
    %s34 = scalar_lea.vmem [#allocation0], 4
    %v35 = vld [vmem:[%s34] sm:$0xf]
    %s36 = scalar_lea.vmem [#allocation2], 4
    %v37 = vld [vmem:[%s36] sm:$0xf]
    %38 = xla_tuple %v35, %v37
    %39 = xla_tuple %38
    %v40 = vmul.f32 %v35, %v37
    %41 = xla_tuple %v40
    %s42 = scalar_lea.vmem %s2, 4
    %43 = vst [vmem:[%s42] sm:$0xf] %v40
    %s44 = scalar_lea.vmem [#allocation0], 8
    %v45 = vld [vmem:[%s44] sm:$0xf]
    %s46 = scalar_lea.vmem [#allocation2], 8
    %v47 = vld [vmem:[%s46] sm:$0xf]
    %48 = xla_tuple %v45, %v47
    %49 = xla_tuple %48
    %v50 = vmul.f32 %v45, %v47
    %51 = xla_tuple %v50
    %s52 = scalar_lea.vmem %s2, 8
    %53 = vst [vmem:[%s52] sm:$0xf] %v50
    %s54 = scalar_lea.vmem [#allocation0], 12
    %v55 = vld [vmem:[%s54] sm:$0xf]
    %s56 = scalar_lea.vmem [#allocation2], 12
    %v57 = vld [vmem:[%s56] sm:$0xf]
    %58 = xla_tuple %v55, %v57
    %59 = xla_tuple %58
    %v60 = vmul.f32 %v55, %v57
    %61 = xla_tuple %v60
    %s62 = scalar_lea.vmem %s2, 12
    %63 = vst [vmem:[%s62] sm:$0xf] %v60
    %s64 = scalar_lea.vmem [#allocation0], 16
    %v65 = vld [vmem:[%s64] sm:$0xf]
    %s66 = scalar_lea.vmem [#allocation2], 16
    %v67 = vld [vmem:[%s66] sm:$0xf]
    %68 = xla_tuple %v65, %v67
    %69 = xla_tuple %68
    %v70 = vmul.f32 %v65, %v67
    %71 = xla_tuple %v70
    %s72 = scalar_lea.vmem %s2, 16
    %73 = vst [vmem:[%s72] sm:$0xf] %v70
    %s74 = scalar_lea.vmem [#allocation0], 20
    %v75 = vld [vmem:[%s74] sm:$0xf]
    %s76 = scalar_lea.vmem [#allocation2], 20
    %v77 = vld [vmem:[%s76] sm:$0xf]
    %78 = xla_tuple %v75, %v77
    %79 = xla_tuple %78
    %v80 = vmul.f32 %v75, %v77
    %81 = xla_tuple %v80
    %s82 = scalar_lea.vmem %s2, 20
    %83 = vst [vmem:[%s82] sm:$0xf] %v80
    %s84 = scalar_lea.vmem [#allocation0], 24
    %v85 = vld [vmem:[%s84] sm:$0xf]
    %s86 = scalar_lea.vmem [#allocation2], 24
    %v87 = vld [vmem:[%s86] sm:$0xf]
    %88 = xla_tuple %v85, %v87
    %89 = xla_tuple %88
    %v90 = vmul.f32 %v85, %v87
    %91 = xla_tuple %v90
    %s92 = scalar_lea.vmem %s2, 24
    %93 = vst [vmem:[%s92] sm:$0xf] %v90
    %s94 = scalar_lea.vmem [#allocation0], 28
    %v95 = vld [vmem:[%s94] sm:$0xf]
    %s96 = scalar_lea.vmem [#allocation2], 28
    %v97 = vld [vmem:[%s96] sm:$0xf]
    %98 = xla_tuple %v95, %v97
    %99 = xla_tuple %98
    %v100 = vmul.f32 %v95, %v97
    %101 = xla_tuple %v100
    %s102 = scalar_lea.vmem %s2, 28
    %103 = vst [vmem:[%s102] sm:$0xf] %v100
    %104 = vsyncpa [#allocation1], 1
    %105 = vsyncpa [#allocation3], 1

// kernel: multi_perspective.1
$region0: #{multi_perspective.1}
  #allocation0 [shape = 'u32[]', space=smem, size = 0x4, offset = 0x4, fixed_abs, tag = 'smem constant byte address 0x4 - core index']
  #allocation1 [shape = 'u32[144,128]{1,0:T(1,128)}', space=vmem, size = 0x12000, scoped, tag = 'internal scratch']
  %s0 = inlined_call_operand.vmem [shape: f32[2,2,8,32], index: 0, kind: input, shape index: {}]
  %s1 = inlined_call_operand.vmem [shape: f32[2,2,8,32], index: 1, kind: input, shape index: {}]
  %s2 = inlined_call_operand.vmem [shape: f32[2,16,32], index: 2, kind: input, shape index: {}]
  %s3 = inlined_call_operand.vmem [shape: f32[2,32,17], index: 3, kind: input, shape index: {}]
  %s4 = inlined_call_operand.vmem [shape: f32[2,2,8,128], index: 4, kind: output, shape index: {}]
  %s5 = sld [smem:[#allocation0]]
  $region49: #{multi_perspective.1} parent=0
    _
  %s7 = ssub.s32 1, %s5
  %s8 = scalar_select 0, %s7, %s5
  loop: start=0, step=1, limit=6
  $region2: #{multi_perspective.1} parent=0 // loop_pre_header
    _
  $region3: #{multi_perspective.1} parent=0 // loop_header
    %s10 = sphi 0, %s14
    %p11 = scmp.ge.s32.totalorder %s10, 6
    %s17 = sphi 0, %s36
    %s18 = sphi 0, %s32
    %s19 = sphi 0, %s28
    %s20 = sphi 0, %s17
    %s21 = sphi 0, %s18
    %s22 = sphi 0, %s19
    %s23 = sphi 0, %s20
    %s24 = sphi 0, %s21
    %s25 = sphi 0, %s22
    %s43 = sphi 0, %s45
    %s46 = sphi 0, %s43
    %s47 = sphi 0, %s46
    %s63 = sphi 0, %s47
    %s71 = sphi 0, %s73
    %s74 = sphi 0, %s71
    %s75 = sphi 0, %s74
    %s91 = sphi 0, %s75
    %s97 = sphi 0, %s99
    %s100 = sphi 0, %s97
    %s101 = sphi 0, %s100
    %s117 = sphi 0, %s101
    %s123 = sphi 0, %s125
    %s126 = sphi 0, %s123
    %s127 = sphi 0, %s126
    %s143 = sphi 0, %s127
    %s153 = sphi 0, %s155
    %s156 = sphi 0, %s153
    %s157 = sphi 0, %s156
    %s173 = sphi 0, %s157
  $region4: #{multi_perspective.1} parent=0 // loop_header_branch
    %13 = sbr.rel (%p11) target = $region8
  $region5: #{multi_perspective.1} parent=0 // loop_body
    %s15 = ssub.s32 %s10, 1
    %s16 = ssub.s32 %s10, 2
    %s26 = sadd.s32 1, %s19
    %p27 = scmp.ge.s32.totalorder %s26, 1
    %s28 = scalar_select %p27, 0, %s26
    %s29 = sadd.s32 1, %s18
    %s30 = scalar_select %p27, %s29, %s18
    %p31 = scmp.ge.s32.totalorder %s30, 2
    %s32 = scalar_select %p31, 0, %s30
    %s33 = sadd.s32 1, %s17
    %s34 = scalar_select %p31, %s33, %s17
    %p35 = scmp.ge.s32.totalorder %s34, 2
    %s36 = scalar_select %p35, 0, %s34
    %s37 = ssub.s32 %s17, %s36
    %s38 = ssub.s32 %s18, %s32
    %s39 = sor.u32 %s37, %s38
    %s40 = ssub.s32 %s19, %s28
    %s41 = sor.u32 %s39, %s40
    %p42 = scmp.eq.s32.totalorder %s41, 0
    %s44 = sadd.s32 %s43, 1
    %s45 = scalar_select %p42, %s43, %s44
    %p48 = pneg %p42
    %p49 = scmp.eq.s32.totalorder %s10, 3
    %p50 = por %p48, %p49
    %p51 = scmp.ne.s32.totalorder %s43, %s46
    %p52 = scmp.eq.s32.totalorder %s10, 0
    %p53 = por %p51, %p52
    %p54 = scmp.ne.s32.totalorder %s43, %s46
    %p55 = scmp.eq.s32.totalorder %s15, 3
    %p56 = por %p54, %p55
    %p57 = scmp.ne.s32.totalorder %s46, %s47
    %p58 = scmp.eq.s32.totalorder %s15, 0
    %p59 = por %p57, %p58
    %p60 = scmp.ne.s32.totalorder %s46, %s47
    %p61 = scmp.eq.s32.totalorder %s16, 3
    %p62 = por %p60, %p61
    %p64 = scmp.ne.s32.totalorder %s47, %s63
    %p65 = scmp.eq.s32.totalorder %s16, 0
    %p66 = por %p64, %p65
    %s67 = ssub.s32 %s17, %s36
    %s68 = ssub.s32 %s18, %s32
    %s69 = sor.u32 %s67, %s68
    %p70 = scmp.eq.s32.totalorder %s69, 0
    %s72 = sadd.s32 %s71, 1
    %s73 = scalar_select %p70, %s71, %s72
    %p76 = pneg %p70
    %p77 = scmp.eq.s32.totalorder %s10, 3
    %p78 = por %p76, %p77
    %p79 = scmp.ne.s32.totalorder %s71, %s74
    %p80 = scmp.eq.s32.totalorder %s10, 0
    %p81 = por %p79, %p80
    %p82 = scmp.ne.s32.totalorder %s71, %s74
    %p83 = scmp.eq.s32.totalorder %s15, 3
    %p84 = por %p82, %p83
    %p85 = scmp.ne.s32.totalorder %s74, %s75
    %p86 = scmp.eq.s32.totalorder %s15, 0
    %p87 = por %p85, %p86
    %p88 = scmp.ne.s32.totalorder %s74, %s75
    %p89 = scmp.eq.s32.totalorder %s16, 3
    %p90 = por %p88, %p89
    %p92 = scmp.ne.s32.totalorder %s75, %s91
    %p93 = scmp.eq.s32.totalorder %s16, 0
    %p94 = por %p92, %p93
    %s95 = ssub.s32 %s17, %s36
    %p96 = scmp.eq.s32.totalorder %s95, 0
    %s98 = sadd.s32 %s97, 1
    %s99 = scalar_select %p96, %s97, %s98
    %p102 = pneg %p96
    %p103 = scmp.eq.s32.totalorder %s10, 3
    %p104 = por %p102, %p103
    %p105 = scmp.ne.s32.totalorder %s97, %s100
    %p106 = scmp.eq.s32.totalorder %s10, 0
    %p107 = por %p105, %p106
    %p108 = scmp.ne.s32.totalorder %s97, %s100
    %p109 = scmp.eq.s32.totalorder %s15, 3
    %p110 = por %p108, %p109
    %p111 = scmp.ne.s32.totalorder %s100, %s101
    %p112 = scmp.eq.s32.totalorder %s15, 0
    %p113 = por %p111, %p112
    %p114 = scmp.ne.s32.totalorder %s100, %s101
    %p115 = scmp.eq.s32.totalorder %s16, 3
    %p116 = por %p114, %p115
    %p118 = scmp.ne.s32.totalorder %s101, %s117
    %p119 = scmp.eq.s32.totalorder %s16, 0
    %p120 = por %p118, %p119
    %s121 = ssub.s32 %s17, %s36
    %p122 = scmp.eq.s32.totalorder %s121, 0
    %s124 = sadd.s32 %s123, 1
    %s125 = scalar_select %p122, %s123, %s124
    %p128 = pneg %p122
    %p129 = scmp.eq.s32.totalorder %s10, 3
    %p130 = por %p128, %p129
    %p131 = scmp.ne.s32.totalorder %s123, %s126
    %p132 = scmp.eq.s32.totalorder %s10, 0
    %p133 = por %p131, %p132
    %p134 = scmp.ne.s32.totalorder %s123, %s126
    %p135 = scmp.eq.s32.totalorder %s15, 3
    %p136 = por %p134, %p135
    %p137 = scmp.ne.s32.totalorder %s126, %s127
    %p138 = scmp.eq.s32.totalorder %s15, 0
    %p139 = por %p137, %p138
    %p140 = scmp.ne.s32.totalorder %s126, %s127
    %p141 = scmp.eq.s32.totalorder %s16, 3
    %p142 = por %p140, %p141
    %p144 = scmp.ne.s32.totalorder %s127, %s143
    %p145 = scmp.eq.s32.totalorder %s16, 0
    %p146 = por %p144, %p145
    %s147 = ssub.s32 %s17, %s36
    %s148 = ssub.s32 %s18, %s32
    %s149 = sor.u32 %s147, %s148
    %s150 = ssub.s32 %s19, %s28
    %s151 = sor.u32 %s149, %s150
    %p152 = scmp.eq.s32.totalorder %s151, 0
    %s154 = sadd.s32 %s153, 1
    %s155 = scalar_select %p152, %s153, %s154
    %p158 = pneg %p152
    %p159 = scmp.eq.s32.totalorder %s10, 3
    %p160 = por %p158, %p159
    %p161 = scmp.ne.s32.totalorder %s153, %s156
    %p162 = scmp.eq.s32.totalorder %s10, 0
    %p163 = por %p161, %p162
    %p164 = scmp.ne.s32.totalorder %s153, %s156
    %p165 = scmp.eq.s32.totalorder %s15, 3
    %p166 = por %p164, %p165
    %p167 = scmp.ne.s32.totalorder %s156, %s157
    %p168 = scmp.eq.s32.totalorder %s15, 0
    %p169 = por %p167, %p168
    %p170 = scmp.ne.s32.totalorder %s156, %s157
    %p171 = scmp.eq.s32.totalorder %s16, 3
    %p172 = por %p170, %p171
    %p174 = scmp.ne.s32.totalorder %s157, %s173
    %p175 = scmp.eq.s32.totalorder %s16, 0
    %p176 = por %p174, %p175
    %p177 = scmp.le.s32.totalorder 1, %s10
    %p178 = scmp.lt.s32.totalorder %s10, 5
    %p179 = pnand %p177, %p178
    %p180 = pneg %p179
    // Predicated region
    $region9: #{multi_perspective.1} parent=5 // pred_check
      _
    $region10: #{multi_perspective.1} parent=5 // pred_check_branch
      %182 = sbr.rel (%p179) target = $region12
    $region11: #{multi_perspective.1} parent=5 // pred_region
      %s183 = ssub.s32 %s10, 1
    $region12: #{multi_perspective.1} parent=5 // pred_fallthru
      _
    %p184 = scmp.lt.s32.totalorder %s10, 4
    // Predicated region
    $region13: #{multi_perspective.1} parent=5 // pred_check
      %p185 = pneg %p184
    $region14: #{multi_perspective.1} parent=5 // pred_check_branch
      %187 = sbr.rel (%p185) target = $region16
    $region15: #{multi_perspective.1} parent=5 // pred_region
      // Predicated region
      $region17: #{multi_perspective.1} parent=15 // pred_check
        %p188 = pneg %p53
      $region18: #{multi_perspective.1} parent=15 // pred_check_branch
        %190 = sbr.rel (%p188) target = $region20
      $region19: #{multi_perspective.1} parent=15 // pred_region
        %p191 = scmp.lt.s32.totalorder %s17, 1
        %s192 = scalar_select %p191, %s17, 1
        %p193 = scmp.lt.s32.totalorder %s18, 1
        %s194 = scalar_select %p193, %s18, 1
        %p195 = scmp.lt.s32.totalorder %s19, 0
        %s196 = scalar_select %p195, %s19, 0
        %s197 = sadd.s32 %s196, %s194
        %s198 = smul.addr %s192, 2
        %s199 = sadd.s32 %s197, %s198
        %s200 = smul.addr %s199, 8
        %s201 = scalar_lea.vmem %s0, %s200
      $region20: #{multi_perspective.1} parent=15 // pred_fallthru
        _
      // Predicated region
      $region21: #{multi_perspective.1} parent=15 // pred_check
        %p202 = pneg %p81
      $region22: #{multi_perspective.1} parent=15 // pred_check_branch
        %204 = sbr.rel (%p202) target = $region24
      $region23: #{multi_perspective.1} parent=15 // pred_region
        %p205 = scmp.lt.s32.totalorder %s17, 1
        %s206 = scalar_select %p205, %s17, 1
        %p207 = scmp.lt.s32.totalorder %s18, 1
        %s208 = scalar_select %p207, %s18, 1
        %s209 = smul.addr %s206, 2
        %s210 = sadd.s32 %s208, %s209
        %s211 = smul.addr %s210, 8
        %s212 = scalar_lea.vmem %s1, %s211
      $region24: #{multi_perspective.1} parent=15 // pred_fallthru
        _
      // Predicated region
      $region25: #{multi_perspective.1} parent=15 // pred_check
        %p213 = pneg %p107
      $region26: #{multi_perspective.1} parent=15 // pred_check_branch
        %215 = sbr.rel (%p213) target = $region28
      $region27: #{multi_perspective.1} parent=15 // pred_region
        %p216 = scmp.lt.s32.totalorder %s17, 1
        %s217 = scalar_select %p216, %s17, 1
        %s218 = smul.addr %s217, 2
        %s219 = smul.addr %s218, 8
        %s220 = scalar_lea.vmem %s2, %s219
      $region28: #{multi_perspective.1} parent=15 // pred_fallthru
        _
      // Predicated region
      $region29: #{multi_perspective.1} parent=15 // pred_check
        %p221 = pneg %p133
      $region30: #{multi_perspective.1} parent=15 // pred_check_branch
        %223 = sbr.rel (%p221) target = $region32
      $region31: #{multi_perspective.1} parent=15 // pred_region
        %p224 = scmp.lt.s32.totalorder %s17, 1
        %s225 = scalar_select %p224, %s17, 1
        %s226 = smul.addr %s225, 4
        %s227 = smul.addr %s226, 8
        %s228 = scalar_lea.vmem %s3, %s227
      $region32: #{multi_perspective.1} parent=15 // pred_fallthru
        _
    $region16: #{multi_perspective.1} parent=5 // pred_fallthru
      _
    %p229 = scmp.le.s32.totalorder 1, %s10
    %p230 = scmp.lt.s32.totalorder %s10, 5
    %p231 = pnand %p229, %p230
    %p232 = pneg %p231
    // Predicated region
    $region33: #{multi_perspective.1} parent=5 // pred_check
      _
    $region34: #{multi_perspective.1} parent=5 // pred_check_branch
      %234 = sbr.rel (%p231) target = $region36
    $region35: #{multi_perspective.1} parent=5 // pred_region
      %s235 = ssub.s32 %s10, 1
      %p236 = scmp.lt.s32.totalorder %s20, 1
      %s237 = scalar_select %p236, %s20, 1
      %p238 = scmp.lt.s32.totalorder %s21, 1
      %s239 = scalar_select %p238, %s21, 1
      %p240 = scmp.lt.s32.totalorder %s22, 0
      %s241 = scalar_select %p240, %s22, 0
      %s242 = sadd.s32 %s241, %s239
      %s243 = smul.addr %s237, 2
      %s244 = sadd.s32 %s242, %s243
      %s245 = smul.addr %s244, 8
      %s246 = scalar_lea.vmem %s0, %s245
      %p247 = pneg %p59
      %p248 = pneg %p56
      %p249 = scmp.lt.s32.totalorder %s20, 1
      %s250 = scalar_select %p249, %s20, 1
      %p251 = scmp.lt.s32.totalorder %s21, 1
      %s252 = scalar_select %p251, %s21, 1
      %s253 = smul.addr %s250, 2
      %s254 = sadd.s32 %s252, %s253
      %s255 = smul.addr %s254, 8
      %s256 = scalar_lea.vmem %s1, %s255
      %p257 = pneg %p87
      %p258 = pneg %p84
      %p259 = scmp.lt.s32.totalorder %s20, 1
      %s260 = scalar_select %p259, %s20, 1
      %s261 = smul.addr %s260, 2
      %s262 = smul.addr %s261, 8
      %s263 = scalar_lea.vmem %s2, %s262
      %p264 = pneg %p113
      %p265 = pneg %p110
      %p266 = scmp.lt.s32.totalorder %s20, 1
      %s267 = scalar_select %p266, %s20, 1
      %s268 = smul.addr %s267, 4
      %s269 = smul.addr %s268, 8
      %s270 = scalar_lea.vmem %s3, %s269
      %p271 = pneg %p139
      %p272 = pneg %p136
      %p273 = pneg %p169
      %p274 = pneg %p166
      %p275 = scmp.lt.s32.totalorder %s20, 1
      %s276 = scalar_select %p275, %s20, 1
      %p277 = scmp.lt.s32.totalorder %s21, 1
      %s278 = scalar_select %p277, %s21, 1
      %p279 = scmp.lt.s32.totalorder %s22, 0
      %s280 = scalar_select %p279, %s22, 0
      %s281 = sadd.s32 %s280, %s278
      %s282 = smul.addr %s276, 2
      %s283 = sadd.s32 %s281, %s282
      %s284 = smul.addr %s283, 8
      %s285 = scalar_lea.vmem %s4, %s284
      %p286 = scmp.lt.s32.totalorder %s20, 1
      %s287 = scalar_select %p286, %s20, 1
      %p288 = scmp.lt.s32.totalorder %s21, 1
      %s289 = scalar_select %p288, %s21, 1
      %p290 = scmp.lt.s32.totalorder %s22, 0
      %s291 = scalar_select %p290, %s22, 0
      %s292 = sadd.s32 %s291, %s289
      %s293 = smul.addr %s287, 2
      %s294 = sadd.s32 %s292, %s293
      %s295 = smul.addr %s294, 8
      %s296 = scalar_lea.vmem %s0, %s295
      %p297 = scmp.lt.s32.totalorder %s20, 1
      %s298 = scalar_select %p297, %s20, 1
      %p299 = scmp.lt.s32.totalorder %s21, 1
      %s300 = scalar_select %p299, %s21, 1
      %s301 = smul.addr %s298, 2
      %s302 = sadd.s32 %s300, %s301
      %s303 = smul.addr %s302, 8
      %s304 = scalar_lea.vmem %s1, %s303
      %p305 = scmp.lt.s32.totalorder %s20, 1
      %s306 = scalar_select %p305, %s20, 1
      %s307 = smul.addr %s306, 2
      %s308 = smul.addr %s307, 8
      %s309 = scalar_lea.vmem %s2, %s308
      %p310 = scmp.lt.s32.totalorder %s20, 1
      %s311 = scalar_select %p310, %s20, 1
      %s312 = smul.addr %s311, 4
      %s313 = smul.addr %s312, 8
      %s314 = scalar_lea.vmem %s3, %s313
      %p315 = scmp.lt.s32.totalorder %s20, 1
      %s316 = scalar_select %p315, %s20, 1
      %p317 = scmp.lt.s32.totalorder %s21, 1
      %s318 = scalar_select %p317, %s21, 1
      %p319 = scmp.lt.s32.totalorder %s22, 0
      %s320 = scalar_select %p319, %s22, 0
      %s321 = sadd.s32 %s320, %s318
      %s322 = smul.addr %s316, 2
      %s323 = sadd.s32 %s321, %s322
      %s324 = smul.addr %s323, 8
      %s325 = scalar_lea.vmem %s4, %s324
      %v326 = vld [vmem:[%s296] sm:$0xff]
      %v327 = vld [vmem:[%s304] sm:$0xff]
      %v328 = vld [vmem:[%s309] sm:$0xff]
      %v329 = vld [vmem:[%s314] sm:$0xff]
      %v330 = vld [vmem:[%s314 + $0x8] sm:$0xff]
      %v331 = vld [vmem:[%s314 + $0x10] sm:$0xff]
      %v332 = vld [vmem:[%s314 + $0x18] sm:$0xff]
      %v333 = vmul.f32 %v326, %v326
      %vm334 = vcmask 261120
      %v336 = vsel %vm334, %v333, 0
      %338 = vmatprep.subr.mxu0 0.0
      %339 = vmatpush1.msra.mxu0 %v329
      %340 = vmatprep.subr.mxu0 0.0
      %341 = vmatpush1.msra.mxu0 %v330
      %342 = vmatprep.subr.mxu0 0.0
      %343 = vmatpush1.msra.mxu0 %v331
      %344 = vmatprep.subr.mxu0 0.0
      %345 = vmatpush1.msra.mxu0 %v332
      %346 = vmatprep.subr.mxu0 0.0
      %347 = vmatpush1.msra.mxu0 0.0
      %348 = vmatprep.subr.mxu0 0.0
      %349 = vmatpush1.msra.mxu0 0.0
      %350 = vmatprep.subr.mxu0 0.0
      %351 = vmatpush1.msra.mxu0 0.0
      %352 = vmatprep.subr.mxu0 0.0
      %353 = vmatpush1.msra.mxu0 0.0
      %354 = vmatprep.subr.mxu0 0.0
      %355 = vmatpush1.msra.mxu0 0.0
      %356 = vmatprep.subr.mxu0 0.0
      %357 = vmatpush1.msra.mxu0 0.0
      %358 = vmatprep.subr.mxu0 0.0
      %359 = vmatpush1.msra.mxu0 0.0
      %360 = vmatprep.subr.mxu0 0.0
      %361 = vmatpush1.msra.mxu0 0.0
      %362 = vmatprep.subr.mxu0 0.0
      %363 = vmatpush1.msra.mxu0 0.0
      %364 = vmatprep.subr.mxu0 0.0
      %365 = vmatpush1.msra.mxu0 0.0
      %366 = vmatprep.subr.mxu0 0.0
      %367 = vmatpush1.msra.mxu0 0.0
      %368 = vmatprep.subr.mxu0 0.0
      %369 = vmatpush1.msra.mxu0 0.0
      %370 = vmatprep.subr.mxu0 0.0
      %371 = vmatpush1.msra.mxu0 0.0
      %372 = vmatprep.subr.mxu0 0.0
      %373 = vmatpush1.msra.mxu0 0.0
      %374 = vmatprep.subr.mxu0 0.0
      %375 = vmatpush1.msra.mxu0 0.0
      %376 = vmatprep.subr.mxu0 0.0
      %377 = vmatpush1.msra.mxu0 0.0
      %378 = vmatprep.subr.mxu0 0.0
      %379 = vmatpush1.msra.mxu0 0.0
      %380 = vmatprep.subr.mxu0 0.0
      %381 = vmatpush1.msra.mxu0 0.0
      %382 = vmatprep.subr.mxu0 0.0
      %383 = vmatpush1.msra.mxu0 0.0
      %384 = vmatprep.subr.mxu0 0.0
      %385 = vmatpush1.msra.mxu0 0.0
      %386 = vmatprep.subr.mxu0 0.0
      %387 = vmatpush1.msra.mxu0 0.0
      %388 = vmatprep.subr.mxu0 0.0
      %389 = vmatpush1.msra.mxu0 0.0
      %390 = vmatprep.subr.mxu0 0.0
      %391 = vmatpush1.msra.mxu0 0.0
      %392 = vmatprep.subr.mxu0 0.0
      %393 = vmatpush1.msra.mxu0 0.0
      %394 = vmatprep.subr.mxu0 0.0
      %395 = vmatpush1.msra.mxu0 0.0
      %396 = vmatprep.subr.mxu0 0.0
      %397 = vmatpush1.msra.mxu0 0.0
      %398 = vmatprep.subr.mxu0 0.0
      %399 = vmatpush1.msra.mxu0 0.0
      %400 = vmatprep.subr.mxu0 0.0
      %401 = vmatpush1.msra.mxu0 0.0
      %402 = vmatprep.mubr.f32.mxu0 0.0
      %403 = vmatmul.mubr.f32.gmra.mrb[0].mxu0 %v336
      %v404 = vpop.f32.mrb[0].mxu0
      %v405 = vadd.f32 0.0, %v404
      %v406 = vpop.f32.mrb[0].mxu0
      %407 = vdwg.mxu0
      %v408 = vmax.f32 %v405, 0.0
      %v409 = vrsqrt.pop %v408
      %v410 = vmin.f32 %v409, 1e+08
      %v411 = vmul.f32 %v327, %v327
      %v413 = vsel %vm334, %v411, 0
      %415 = vmatprep.subr.mxu0 0.0
      %416 = vmatpush1.msra.mxu0 %v329
      %417 = vmatprep.subr.mxu0 0.0
      %418 = vmatpush1.msra.mxu0 %v330
      %419 = vmatprep.subr.mxu0 0.0
      %420 = vmatpush1.msra.mxu0 %v331
      %421 = vmatprep.subr.mxu0 0.0
      %422 = vmatpush1.msra.mxu0 %v332
      %423 = vmatprep.subr.mxu0 0.0
      %424 = vmatpush1.msra.mxu0 0.0
      %425 = vmatprep.subr.mxu0 0.0
      %426 = vmatpush1.msra.mxu0 0.0
      %427 = vmatprep.subr.mxu0 0.0
      %428 = vmatpush1.msra.mxu0 0.0
      %429 = vmatprep.subr.mxu0 0.0
      %430 = vmatpush1.msra.mxu0 0.0
      %431 = vmatprep.subr.mxu0 0.0
      %432 = vmatpush1.msra.mxu0 0.0
      %433 = vmatprep.subr.mxu0 0.0
      %434 = vmatpush1.msra.mxu0 0.0
      %435 = vmatprep.subr.mxu0 0.0
      %436 = vmatpush1.msra.mxu0 0.0
      %437 = vmatprep.subr.mxu0 0.0
      %438 = vmatpush1.msra.mxu0 0.0
      %439 = vmatprep.subr.mxu0 0.0
      %440 = vmatpush1.msra.mxu0 0.0
      %441 = vmatprep.subr.mxu0 0.0
      %442 = vmatpush1.msra.mxu0 0.0
      %443 = vmatprep.subr.mxu0 0.0
      %444 = vmatpush1.msra.mxu0 0.0
      %445 = vmatprep.subr.mxu0 0.0
      %446 = vmatpush1.msra.mxu0 0.0
      %447 = vmatprep.subr.mxu0 0.0
      %448 = vmatpush1.msra.mxu0 0.0
      %449 = vmatprep.subr.mxu0 0.0
      %450 = vmatpush1.msra.mxu0 0.0
      %451 = vmatprep.subr.mxu0 0.0
      %452 = vmatpush1.msra.mxu0 0.0
      %453 = vmatprep.subr.mxu0 0.0
      %454 = vmatpush1.msra.mxu0 0.0
      %455 = vmatprep.subr.mxu0 0.0
      %456 = vmatpush1.msra.mxu0 0.0
      %457 = vmatprep.subr.mxu0 0.0
      %458 = vmatpush1.msra.mxu0 0.0
      %459 = vmatprep.subr.mxu0 0.0
      %460 = vmatpush1.msra.mxu0 0.0
      %461 = vmatprep.subr.mxu0 0.0
      %462 = vmatpush1.msra.mxu0 0.0
      %463 = vmatprep.subr.mxu0 0.0
      %464 = vmatpush1.msra.mxu0 0.0
      %465 = vmatprep.subr.mxu0 0.0
      %466 = vmatpush1.msra.mxu0 0.0
      %467 = vmatprep.subr.mxu0 0.0
      %468 = vmatpush1.msra.mxu0 0.0
      %469 = vmatprep.subr.mxu0 0.0
      %470 = vmatpush1.msra.mxu0 0.0
      %471 = vmatprep.subr.mxu0 0.0
      %472 = vmatpush1.msra.mxu0 0.0
      %473 = vmatprep.subr.mxu0 0.0
      %474 = vmatpush1.msra.mxu0 0.0
      %475 = vmatprep.subr.mxu0 0.0
      %476 = vmatpush1.msra.mxu0 0.0
      %477 = vmatprep.subr.mxu0 0.0
      %478 = vmatpush1.msra.mxu0 0.0
      %479 = vmatprep.mubr.f32.mxu0 0.0
      %480 = vmatmul.mubr.f32.gmra.mrb[0].mxu0 %v413
      %v481 = vpop.f32.mrb[0].mxu0
      %v482 = vadd.f32 0.0, %v481
      %v483 = vpop.f32.mrb[0].mxu0
      %484 = vdwg.mxu0
      %v485 = vmax.f32 %v482, 0.0
      %v486 = vrsqrt.pop %v485
      %v487 = vmin.f32 %v486, 1e+08
      %488 = vxpose.xlu0.b32.start [1/16] %v487, 128
      %489 = vxpose.xlu0.b32.cont [2/16] 0.0, 128
      %490 = vxpose.xlu0.b32.cont [3/16] 0.0, 128
      %491 = vxpose.xlu0.b32.cont [4/16] 0.0, 128
      %492 = vxpose.xlu0.b32.cont [5/16] 0.0, 128
      %493 = vxpose.xlu0.b32.cont [6/16] 0.0, 128
      %494 = vxpose.xlu0.b32.cont [7/16] 0.0, 128
      %495 = vxpose.xlu0.b32.cont [8/16] 0.0, 128
      %496 = vxpose.xlu0.b32.cont [9/16] 0.0, 128
      %497 = vxpose.xlu0.b32.cont [10/16] 0.0, 128
      %498 = vxpose.xlu0.b32.cont [11/16] 0.0, 128
      %499 = vxpose.xlu0.b32.cont [12/16] 0.0, 128
      %500 = vxpose.xlu0.b32.cont [13/16] 0.0, 128
      %501 = vxpose.xlu0.b32.cont [14/16] 0.0, 128
      %502 = vxpose.xlu0.b32.cont [15/16] 0.0, 128
      %503 = vxpose.xlu0.b32.end [16/16] 0.0, 128
      %v504 = vpop.trf.xlu0
      %v505 = vpop.trf.xlu0
      %v506 = vpop.trf.xlu0
      %v507 = vpop.trf.xlu0
      %v508 = vpop.trf.xlu0
      %v509 = vpop.trf.xlu0
      %v510 = vpop.trf.xlu0
      %v511 = vpop.trf.xlu0
      %v512 = vpop.trf.xlu0
      %v513 = vpop.trf.xlu0
      %v514 = vpop.trf.xlu0
      %v515 = vpop.trf.xlu0
      %v516 = vpop.trf.xlu0
      %v517 = vpop.trf.xlu0
      %v518 = vpop.trf.xlu0
      %v519 = vpop.trf.xlu0
      %v521 = vsel %vm334, %v326, 0
      %v524 = vsel %vm334, %v327, 0
      %526 = vmatprep.subr.mxu0 0.0
      %527 = vmatpush1.xpose.msra.mxu0 %v524
      %528 = vmatprep.subr.mxu0 0.0
      %529 = vmatpush1.xpose.msra.mxu0 0.0
      %530 = vmatprep.subr.mxu0 0.0
      %531 = vmatpush1.xpose.msra.mxu0 0.0
      %532 = vmatprep.subr.mxu0 0.0
      %533 = vmatpush1.xpose.msra.mxu0 0.0
      %534 = vmatprep.subr.mxu0 0.0
      %535 = vmatpush1.xpose.msra.mxu0 0.0
      %536 = vmatprep.subr.mxu0 0.0
      %537 = vmatpush1.xpose.msra.mxu0 0.0
      %538 = vmatprep.subr.mxu0 0.0
      %539 = vmatpush1.xpose.msra.mxu0 0.0
      %540 = vmatprep.subr.mxu0 0.0
      %541 = vmatpush1.xpose.msra.mxu0 0.0
      %542 = vmatprep.subr.mxu0 0.0
      %543 = vmatpush1.xpose.msra.mxu0 0.0
      %544 = vmatprep.subr.mxu0 0.0
      %545 = vmatpush1.xpose.msra.mxu0 0.0
      %546 = vmatprep.subr.mxu0 0.0
      %547 = vmatpush1.xpose.msra.mxu0 0.0
      %548 = vmatprep.subr.mxu0 0.0
      %549 = vmatpush1.xpose.msra.mxu0 0.0
      %550 = vmatprep.subr.mxu0 0.0
      %551 = vmatpush1.xpose.msra.mxu0 0.0
      %552 = vmatprep.subr.mxu0 0.0
      %553 = vmatpush1.xpose.msra.mxu0 0.0
      %554 = vmatprep.subr.mxu0 0.0
      %555 = vmatpush1.xpose.msra.mxu0 0.0
      %556 = vmatprep.subr.mxu0 0.0
      %557 = vmatpush1.xpose.msra.mxu0 0.0
      %558 = vmatprep.subr.mxu0 0.0
      %559 = vmatpush1.xpose.msra.mxu0 0.0
      %560 = vmatprep.subr.mxu0 0.0
      %561 = vmatpush1.xpose.msra.mxu0 0.0
      %562 = vmatprep.subr.mxu0 0.0
      %563 = vmatpush1.xpose.msra.mxu0 0.0
      %564 = vmatprep.subr.mxu0 0.0
      %565 = vmatpush1.xpose.msra.mxu0 0.0
      %566 = vmatprep.subr.mxu0 0.0
      %567 = vmatpush1.xpose.msra.mxu0 0.0
      %568 = vmatprep.subr.mxu0 0.0
      %569 = vmatpush1.xpose.msra.mxu0 0.0
      %570 = vmatprep.subr.mxu0 0.0
      %571 = vmatpush1.xpose.msra.mxu0 0.0
      %572 = vmatprep.subr.mxu0 0.0
      %573 = vmatpush1.xpose.msra.mxu0 0.0
      %574 = vmatprep.subr.mxu0 0.0
      %575 = vmatpush1.xpose.msra.mxu0 0.0
      %576 = vmatprep.subr.mxu0 0.0
      %577 = vmatpush1.xpose.msra.mxu0 0.0
      %578 = vmatprep.subr.mxu0 0.0
      %579 = vmatpush1.xpose.msra.mxu0 0.0
      %580 = vmatprep.subr.mxu0 0.0
      %581 = vmatpush1.xpose.msra.mxu0 0.0
      %582 = vmatprep.subr.mxu0 0.0
      %583 = vmatpush1.xpose.msra.mxu0 0.0
      %584 = vmatprep.subr.mxu0 0.0
      %585 = vmatpush1.xpose.msra.mxu0 0.0
      %586 = vmatprep.subr.mxu0 0.0
      %587 = vmatpush1.xpose.msra.mxu0 0.0
      %588 = vmatprep.subr.mxu0 0.0
      %589 = vmatpush1.xpose.msra.mxu0 0.0
      %590 = vmatprep.mubr.f32.mxu0 0.0
      %591 = vmatmul.mubr.f32.gmra.mrb[0].mxu0 %v521
      %v592 = vpop.f32.mrb[0].mxu0
      %v593 = vadd.f32 0.0, %v592
      %v594 = vpop.f32.mrb[0].mxu0
      %595 = vdwg.mxu0
      %v596 = vlaneseq
      %v597 = vshrl.u32 %v596, 7
      %v598 = vsub.s32 0, %v597
      %v599 = vrot.slane %v506, %v598
      %v600 = vmul.f32 %v593, %v599
      %v601 = vlaneseq
      %v602 = vshrl.u32 %v601, 7
      %v603 = vsub.s32 7, %v602
      %v604 = vrot.slane %v327, %v603
      %v605 = vmul.f32 %v326, %v604
      %v607 = vsel %vm334, %v605, 0
      %609 = vmatprep.subr.mxu0 0.0
      %610 = vmatpush1.msra.mxu0 %v329
      %611 = vmatprep.subr.mxu0 0.0
      %612 = vmatpush1.msra.mxu0 %v330
      %613 = vmatprep.subr.mxu0 0.0
      %614 = vmatpush1.msra.mxu0 %v331
      %615 = vmatprep.subr.mxu0 0.0
      %616 = vmatpush1.msra.mxu0 %v332
      %617 = vmatprep.subr.mxu0 0.0
      %618 = vmatpush1.msra.mxu0 0.0
      %619 = vmatprep.subr.mxu0 0.0
      %620 = vmatpush1.msra.mxu0 0.0
      %621 = vmatprep.subr.mxu0 0.0
      %622 = vmatpush1.msra.mxu0 0.0
      %623 = vmatprep.subr.mxu0 0.0
      %624 = vmatpush1.msra.mxu0 0.0
      %625 = vmatprep.subr.mxu0 0.0
      %626 = vmatpush1.msra.mxu0 0.0
      %627 = vmatprep.subr.mxu0 0.0
      %628 = vmatpush1.msra.mxu0 0.0
      %629 = vmatprep.subr.mxu0 0.0
      %630 = vmatpush1.msra.mxu0 0.0
      %631 = vmatprep.subr.mxu0 0.0
      %632 = vmatpush1.msra.mxu0 0.0
      %633 = vmatprep.subr.mxu0 0.0
      %634 = vmatpush1.msra.mxu0 0.0
      %635 = vmatprep.subr.mxu0 0.0
      %636 = vmatpush1.msra.mxu0 0.0
      %637 = vmatprep.subr.mxu0 0.0
      %638 = vmatpush1.msra.mxu0 0.0
      %639 = vmatprep.subr.mxu0 0.0
      %640 = vmatpush1.msra.mxu0 0.0
      %641 = vmatprep.subr.mxu0 0.0
      %642 = vmatpush1.msra.mxu0 0.0
      %643 = vmatprep.subr.mxu0 0.0
      %644 = vmatpush1.msra.mxu0 0.0
      %645 = vmatprep.subr.mxu0 0.0
      %646 = vmatpush1.msra.mxu0 0.0
      %647 = vmatprep.subr.mxu0 0.0
      %648 = vmatpush1.msra.mxu0 0.0
      %649 = vmatprep.subr.mxu0 0.0
      %650 = vmatpush1.msra.mxu0 0.0
      %651 = vmatprep.subr.mxu0 0.0
      %652 = vmatpush1.msra.mxu0 0.0
      %653 = vmatprep.subr.mxu0 0.0
      %654 = vmatpush1.msra.mxu0 0.0
      %655 = vmatprep.subr.mxu0 0.0
      %656 = vmatpush1.msra.mxu0 0.0
      %657 = vmatprep.subr.mxu0 0.0
      %658 = vmatpush1.msra.mxu0 0.0
      %659 = vmatprep.subr.mxu0 0.0
      %660 = vmatpush1.msra.mxu0 0.0
      %661 = vmatprep.subr.mxu0 0.0
      %662 = vmatpush1.msra.mxu0 0.0
      %663 = vmatprep.subr.mxu0 0.0
      %664 = vmatpush1.msra.mxu0 0.0
      %665 = vmatprep.subr.mxu0 0.0
      %666 = vmatpush1.msra.mxu0 0.0
      %667 = vmatprep.subr.mxu0 0.0
      %668 = vmatpush1.msra.mxu0 0.0
      %669 = vmatprep.subr.mxu0 0.0
      %670 = vmatpush1.msra.mxu0 0.0
      %671 = vmatprep.subr.mxu0 0.0
      %672 = vmatpush1.msra.mxu0 0.0
      %673 = vmatprep.mubr.f32.mxu0 0.0
      %674 = vmatmul.mubr.f32.gmra.mrb[0].mxu0 %v607
      %v675 = vpop.f32.mrb[0].mxu0
      %v676 = vadd.f32 0.0, %v675
      %v677 = vpop.f32.mrb[0].mxu0
      %678 = vdwg.mxu0
      %v679 = vmul.f32 %v676, %v410
      %v680 = vlaneseq
      %v681 = vshrl.u32 %v680, 7
      %v682 = vsub.s32 7, %v681
      %v683 = vrot.slane %v487, %v682
      %v684 = vmul.f32 %v679, %v683
      %v685 = vlaneseq
      %v686 = vshrl.u32 %v685, 7
      %v687 = vsub.s32 4, %v686
      %v688 = vrot.slane %v328, %v687
      %v689 = vmul.f32 %v326, %v688
      %v691 = vsel %vm334, %v689, 0
      %693 = vmatprep.subr.mxu0 0.0
      %694 = vmatpush1.xpose.msra.mxu0 %v524
      %695 = vmatprep.subr.mxu0 0.0
      %696 = vmatpush1.xpose.msra.mxu0 0.0
      %697 = vmatprep.subr.mxu0 0.0
      %698 = vmatpush1.xpose.msra.mxu0 0.0
      %699 = vmatprep.subr.mxu0 0.0
      %700 = vmatpush1.xpose.msra.mxu0 0.0
      %701 = vmatprep.subr.mxu0 0.0
      %702 = vmatpush1.xpose.msra.mxu0 0.0
      %703 = vmatprep.subr.mxu0 0.0
      %704 = vmatpush1.xpose.msra.mxu0 0.0
      %705 = vmatprep.subr.mxu0 0.0
      %706 = vmatpush1.xpose.msra.mxu0 0.0
      %707 = vmatprep.subr.mxu0 0.0
      %708 = vmatpush1.xpose.msra.mxu0 0.0
      %709 = vmatprep.subr.mxu0 0.0
      %710 = vmatpush1.xpose.msra.mxu0 0.0
      %711 = vmatprep.subr.mxu0 0.0
      %712 = vmatpush1.xpose.msra.mxu0 0.0
      %713 = vmatprep.subr.mxu0 0.0
      %714 = vmatpush1.xpose.msra.mxu0 0.0
      %715 = vmatprep.subr.mxu0 0.0
      %716 = vmatpush1.xpose.msra.mxu0 0.0
      %717 = vmatprep.subr.mxu0 0.0
      %718 = vmatpush1.xpose.msra.mxu0 0.0
      %719 = vmatprep.subr.mxu0 0.0
      %720 = vmatpush1.xpose.msra.mxu0 0.0
      %721 = vmatprep.subr.mxu0 0.0
      %722 = vmatpush1.xpose.msra.mxu0 0.0
      %723 = vmatprep.subr.mxu0 0.0
      %724 = vmatpush1.xpose.msra.mxu0 0.0
      %725 = vmatprep.subr.mxu0 0.0
      %726 = vmatpush1.xpose.msra.mxu0 0.0
      %727 = vmatprep.subr.mxu0 0.0
      %728 = vmatpush1.xpose.msra.mxu0 0.0
      %729 = vmatprep.subr.mxu0 0.0
      %730 = vmatpush1.xpose.msra.mxu0 0.0
      %731 = vmatprep.subr.mxu0 0.0
      %732 = vmatpush1.xpose.msra.mxu0 0.0
      %733 = vmatprep.subr.mxu0 0.0
      %734 = vmatpush1.xpose.msra.mxu0 0.0
      %735 = vmatprep.subr.mxu0 0.0
      %736 = vmatpush1.xpose.msra.mxu0 0.0
      %737 = vmatprep.subr.mxu0 0.0
      %738 = vmatpush1.xpose.msra.mxu0 0.0
      %739 = vmatprep.subr.mxu0 0.0
      %740 = vmatpush1.xpose.msra.mxu0 0.0
      %741 = vmatprep.subr.mxu0 0.0
      %742 = vmatpush1.xpose.msra.mxu0 0.0
      %743 = vmatprep.subr.mxu0 0.0
      %744 = vmatpush1.xpose.msra.mxu0 0.0
      %745 = vmatprep.subr.mxu0 0.0
      %746 = vmatpush1.xpose.msra.mxu0 0.0
      %747 = vmatprep.subr.mxu0 0.0
      %748 = vmatpush1.xpose.msra.mxu0 0.0
      %749 = vmatprep.subr.mxu0 0.0
      %750 = vmatpush1.xpose.msra.mxu0 0.0
      %751 = vmatprep.subr.mxu0 0.0
      %752 = vmatpush1.xpose.msra.mxu0 0.0
      %753 = vmatprep.subr.mxu0 0.0
      %754 = vmatpush1.xpose.msra.mxu0 0.0
      %755 = vmatprep.subr.mxu0 0.0
      %756 = vmatpush1.xpose.msra.mxu0 0.0
      %757 = vmatprep.mubr.f32.mxu0 0.0
      %758 = vmatmul.mubr.f32.gmra.mrb[0].mxu0 %v691
      %v759 = vpop.f32.mrb[0].mxu0
      %v760 = vadd.f32 0.0, %v759
      %v761 = vpop.f32.mrb[0].mxu0
      %762 = vdwg.mxu0
      %v763 = vlaneseq
      %v764 = vshrl.u32 %v763, 7
      %v765 = vsub.s32 4, %v764
      %v766 = vrot.slane %v504, %v765
      %v767 = vmul.f32 %v760, %v766
      %vm768 = vcmask 64512
      %v769 = vsel %vm768, %v767, -inf
      %770 = vmax.xlane.f32.xlu0 %v769
      %v771 = vpop.xlane.xlu0 %770
      %v772 = vlaneseq
      %v773 = vshrl.u32 %v772, 7
      %v774 = vsub.s32 5, %v773
      %v775 = vrot.slane %v328, %v774
      %v776 = vmul.f32 %v326, %v775
      %v778 = vsel %vm334, %v776, 0
      %780 = vmatprep.subr.mxu0 0.0
      %781 = vmatpush1.xpose.msra.mxu0 %v524
      %782 = vmatprep.subr.mxu0 0.0
      %783 = vmatpush1.xpose.msra.mxu0 0.0
      %784 = vmatprep.subr.mxu0 0.0
      %785 = vmatpush1.xpose.msra.mxu0 0.0
      %786 = vmatprep.subr.mxu0 0.0
      %787 = vmatpush1.xpose.msra.mxu0 0.0
      %788 = vmatprep.subr.mxu0 0.0
      %789 = vmatpush1.xpose.msra.mxu0 0.0
      %790 = vmatprep.subr.mxu0 0.0
      %791 = vmatpush1.xpose.msra.mxu0 0.0
      %792 = vmatprep.subr.mxu0 0.0
      %793 = vmatpush1.xpose.msra.mxu0 0.0
      %794 = vmatprep.subr.mxu0 0.0
      %795 = vmatpush1.xpose.msra.mxu0 0.0
      %796 = vmatprep.subr.mxu0 0.0
      %797 = vmatpush1.xpose.msra.mxu0 0.0
      %798 = vmatprep.subr.mxu0 0.0
      %799 = vmatpush1.xpose.msra.mxu0 0.0
      %800 = vmatprep.subr.mxu0 0.0
      %801 = vmatpush1.xpose.msra.mxu0 0.0
      %802 = vmatprep.subr.mxu0 0.0
      %803 = vmatpush1.xpose.msra.mxu0 0.0
      %804 = vmatprep.subr.mxu0 0.0
      %805 = vmatpush1.xpose.msra.mxu0 0.0
      %806 = vmatprep.subr.mxu0 0.0
      %807 = vmatpush1.xpose.msra.mxu0 0.0
      %808 = vmatprep.subr.mxu0 0.0
      %809 = vmatpush1.xpose.msra.mxu0 0.0
      %810 = vmatprep.subr.mxu0 0.0
      %811 = vmatpush1.xpose.msra.mxu0 0.0
      %812 = vmatprep.subr.mxu0 0.0
      %813 = vmatpush1.xpose.msra.mxu0 0.0
      %814 = vmatprep.subr.mxu0 0.0
      %815 = vmatpush1.xpose.msra.mxu0 0.0
      %816 = vmatprep.subr.mxu0 0.0
      %817 = vmatpush1.xpose.msra.mxu0 0.0
      %818 = vmatprep.subr.mxu0 0.0
      %819 = vmatpush1.xpose.msra.mxu0 0.0
      %820 = vmatprep.subr.mxu0 0.0
      %821 = vmatpush1.xpose.msra.mxu0 0.0
      %822 = vmatprep.subr.mxu0 0.0
      %823 = vmatpush1.xpose.msra.mxu0 0.0
      %824 = vmatprep.subr.mxu0 0.0
      %825 = vmatpush1.xpose.msra.mxu0 0.0
      %826 = vmatprep.subr.mxu0 0.0
      %827 = vmatpush1.xpose.msra.mxu0 0.0
      %828 = vmatprep.subr.mxu0 0.0
      %829 = vmatpush1.xpose.msra.mxu0 0.0
      %830 = vmatprep.subr.mxu0 0.0
      %831 = vmatpush1.xpose.msra.mxu0 0.0
      %832 = vmatprep.subr.mxu0 0.0
      %833 = vmatpush1.xpose.msra.mxu0 0.0
      %834 = vmatprep.subr.mxu0 0.0
      %835 = vmatpush1.xpose.msra.mxu0 0.0
      %836 = vmatprep.subr.mxu0 0.0
      %837 = vmatpush1.xpose.msra.mxu0 0.0
      %838 = vmatprep.subr.mxu0 0.0
      %839 = vmatpush1.xpose.msra.mxu0 0.0
      %840 = vmatprep.subr.mxu0 0.0
      %841 = vmatpush1.xpose.msra.mxu0 0.0
      %842 = vmatprep.subr.mxu0 0.0
      %843 = vmatpush1.xpose.msra.mxu0 0.0
      %844 = vmatprep.mubr.f32.mxu0 0.0
      %845 = vmatmul.mubr.f32.gmra.mrb[0].mxu0 %v778
      %v846 = vpop.f32.mrb[0].mxu0
      %v847 = vadd.f32 0.0, %v846
      %v848 = vpop.f32.mrb[0].mxu0
      %849 = vdwg.mxu0
      %v850 = vlaneseq
      %v851 = vshrl.u32 %v850, 7
      %v852 = vsub.s32 5, %v851
      %v853 = vrot.slane %v504, %v852
      %v854 = vmul.f32 %v847, %v853
      %v855 = vsel %vm768, %v854, -inf
      %856 = vmax.xlane.f32.xlu0 %v855
      %v857 = vpop.xlane.xlu0 %856
      %v858 = vlaneseq
      %v859 = vshrl.u32 %v858, 7
      %v860 = vsub.s32 6, %v859
      %v861 = vrot.slane %v328, %v860
      %v862 = vmul.f32 %v326, %v861
      %v864 = vsel %vm334, %v862, 0
      %866 = vmatprep.subr.mxu0 0.0
      %867 = vmatpush1.xpose.msra.mxu0 %v524
      %868 = vmatprep.subr.mxu0 0.0
      %869 = vmatpush1.xpose.msra.mxu0 0.0
      %870 = vmatprep.subr.mxu0 0.0
      %871 = vmatpush1.xpose.msra.mxu0 0.0
      %872 = vmatprep.subr.mxu0 0.0
      %873 = vmatpush1.xpose.msra.mxu0 0.0
      %874 = vmatprep.subr.mxu0 0.0
      %875 = vmatpush1.xpose.msra.mxu0 0.0
      %876 = vmatprep.subr.mxu0 0.0
      %877 = vmatpush1.xpose.msra.mxu0 0.0
      %878 = vmatprep.subr.mxu0 0.0
      %879 = vmatpush1.xpose.msra.mxu0 0.0
      %880 = vmatprep.subr.mxu0 0.0
      %881 = vmatpush1.xpose.msra.mxu0 0.0
      %882 = vmatprep.subr.mxu0 0.0
      %883 = vmatpush1.xpose.msra.mxu0 0.0
      %884 = vmatprep.subr.mxu0 0.0
      %885 = vmatpush1.xpose.msra.mxu0 0.0
      %886 = vmatprep.subr.mxu0 0.0
      %887 = vmatpush1.xpose.msra.mxu0 0.0
      %888 = vmatprep.subr.mxu0 0.0
      %889 = vmatpush1.xpose.msra.mxu0 0.0
      %890 = vmatprep.subr.mxu0 0.0
      %891 = vmatpush1.xpose.msra.mxu0 0.0
      %892 = vmatprep.subr.mxu0 0.0
      %893 = vmatpush1.xpose.msra.mxu0 0.0
      %894 = vmatprep.subr.mxu0 0.0
      %895 = vmatpush1.xpose.msra.mxu0 0.0
      %896 = vmatprep.subr.mxu0 0.0
      %897 = vmatpush1.xpose.msra.mxu0 0.0
      %898 = vmatprep.subr.mxu0 0.0
      %899 = vmatpush1.xpose.msra.mxu0 0.0
      %900 = vmatprep.subr.mxu0 0.0
      %901 = vmatpush1.xpose.msra.mxu0 0.0
      %902 = vmatprep.subr.mxu0 0.0
      %903 = vmatpush1.xpose.msra.mxu0 0.0
      %904 = vmatprep.subr.mxu0 0.0
      %905 = vmatpush1.xpose.msra.mxu0 0.0
      %906 = vmatprep.subr.mxu0 0.0
      %907 = vmatpush1.xpose.msra.mxu0 0.0
      %908 = vmatprep.subr.mxu0 0.0
      %909 = vmatpush1.xpose.msra.mxu0 0.0
      %910 = vmatprep.subr.mxu0 0.0
      %911 = vmatpush1.xpose.msra.mxu0 0.0
      %912 = vmatprep.subr.mxu0 0.0
      %913 = vmatpush1.xpose.msra.mxu0 0.0
      %914 = vmatprep.subr.mxu0 0.0
      %915 = vmatpush1.xpose.msra.mxu0 0.0
      %916 = vmatprep.subr.mxu0 0.0
      %917 = vmatpush1.xpose.msra.mxu0 0.0
      %918 = vmatprep.subr.mxu0 0.0
      %919 = vmatpush1.xpose.msra.mxu0 0.0
      %920 = vmatprep.subr.mxu0 0.0
      %921 = vmatpush1.xpose.msra.mxu0 0.0
      %922 = vmatprep.subr.mxu0 0.0
      %923 = vmatpush1.xpose.msra.mxu0 0.0
      %924 = vmatprep.subr.mxu0 0.0
      %925 = vmatpush1.xpose.msra.mxu0 0.0
      %926 = vmatprep.subr.mxu0 0.0
      %927 = vmatpush1.xpose.msra.mxu0 0.0
      %928 = vmatprep.subr.mxu0 0.0
      %929 = vmatpush1.xpose.msra.mxu0 0.0
      %930 = vmatprep.mubr.f32.mxu0 0.0
      %931 = vmatmul.mubr.f32.gmra.mrb[0].mxu0 %v864
      %v932 = vpop.f32.mrb[0].mxu0
      %v933 = vadd.f32 0.0, %v932
      %v934 = vpop.f32.mrb[0].mxu0
      %935 = vdwg.mxu0
      %v936 = vlaneseq
      %v937 = vshrl.u32 %v936, 7
      %v938 = vsub.s32 6, %v937
      %v939 = vrot.slane %v504, %v938
      %v940 = vmul.f32 %v933, %v939
      %v941 = vsel %vm768, %v940, -inf
      %942 = vmax.xlane.f32.xlu0 %v941
      %v943 = vpop.xlane.xlu0 %942
      %v944 = vlaneseq
      %v945 = vshrl.u32 %v944, 7
      %v946 = vsub.s32 7, %v945
      %v947 = vrot.slane %v328, %v946
      %v948 = vmul.f32 %v326, %v947
      %v950 = vsel %vm334, %v948, 0
      %952 = vmatprep.subr.mxu0 0.0
      %953 = vmatpush1.xpose.msra.mxu0 %v524
      %954 = vmatprep.subr.mxu0 0.0
      %955 = vmatpush1.xpose.msra.mxu0 0.0
      %956 = vmatprep.subr.mxu0 0.0
      %957 = vmatpush1.xpose.msra.mxu0 0.0
      %958 = vmatprep.subr.mxu0 0.0
      %959 = vmatpush1.xpose.msra.mxu0 0.0
      %960 = vmatprep.subr.mxu0 0.0
      %961 = vmatpush1.xpose.msra.mxu0 0.0
      %962 = vmatprep.subr.mxu0 0.0
      %963 = vmatpush1.xpose.msra.mxu0 0.0
      %964 = vmatprep.subr.mxu0 0.0
      %965 = vmatpush1.xpose.msra.mxu0 0.0
      %966 = vmatprep.subr.mxu0 0.0
      %967 = vmatpush1.xpose.msra.mxu0 0.0
      %968 = vmatprep.subr.mxu0 0.0
      %969 = vmatpush1.xpose.msra.mxu0 0.0
      %970 = vmatprep.subr.mxu0 0.0
      %971 = vmatpush1.xpose.msra.mxu0 0.0
      %972 = vmatprep.subr.mxu0 0.0
      %973 = vmatpush1.xpose.msra.mxu0 0.0
      %974 = vmatprep.subr.mxu0 0.0
      %975 = vmatpush1.xpose.msra.mxu0 0.0
      %976 = vmatprep.subr.mxu0 0.0
      %977 = vmatpush1.xpose.msra.mxu0 0.0
      %978 = vmatprep.subr.mxu0 0.0
      %979 = vmatpush1.xpose.msra.mxu0 0.0
      %980 = vmatprep.subr.mxu0 0.0
      %981 = vmatpush1.xpose.msra.mxu0 0.0
      %982 = vmatprep.subr.mxu0 0.0
      %983 = vmatpush1.xpose.msra.mxu0 0.0
      %984 = vmatprep.subr.mxu0 0.0
      %985 = vmatpush1.xpose.msra.mxu0 0.0
      %986 = vmatprep.subr.mxu0 0.0
      %987 = vmatpush1.xpose.msra.mxu0 0.0
      %988 = vmatprep.subr.mxu0 0.0
      %989 = vmatpush1.xpose.msra.mxu0 0.0
      %990 = vmatprep.subr.mxu0 0.0
      %991 = vmatpush1.xpose.msra.mxu0 0.0
      %992 = vmatprep.subr.mxu0 0.0
      %993 = vmatpush1.xpose.msra.mxu0 0.0
      %994 = vmatprep.subr.mxu0 0.0
      %995 = vmatpush1.xpose.msra.mxu0 0.0
      %996 = vmatprep.subr.mxu0 0.0
      %997 = vmatpush1.xpose.msra.mxu0 0.0
      %998 = vmatprep.subr.mxu0 0.0
      %999 = vmatpush1.xpose.msra.mxu0 0.0
      %1000 = vmatprep.subr.mxu0 0.0
      %1001 = vmatpush1.xpose.msra.mxu0 0.0
      %1002 = vmatprep.subr.mxu0 0.0
      %1003 = vmatpush1.xpose.msra.mxu0 0.0
      %1004 = vmatprep.subr.mxu0 0.0
      %1005 = vmatpush1.xpose.msra.mxu0 0.0
      %1006 = vmatprep.subr.mxu0 0.0
      %1007 = vmatpush1.xpose.msra.mxu0 0.0
      %1008 = vmatprep.subr.mxu0 0.0
      %1009 = vmatpush1.xpose.msra.mxu0 0.0
      %1010 = vmatprep.subr.mxu0 0.0
      %1011 = vmatpush1.xpose.msra.mxu0 0.0
      %1012 = vmatprep.subr.mxu0 0.0
      %1013 = vmatpush1.xpose.msra.mxu0 0.0
      %1014 = vmatprep.subr.mxu0 0.0
      %1015 = vmatpush1.xpose.msra.mxu0 0.0
      %1016 = vmatprep.mubr.f32.mxu0 0.0
      %1017 = vmatmul.mubr.f32.gmra.mrb[0].mxu0 %v950
      %v1018 = vpop.f32.mrb[0].mxu0
      %v1019 = vadd.f32 0.0, %v1018
      %v1020 = vpop.f32.mrb[0].mxu0
      %1021 = vdwg.mxu0
      %v1022 = vlaneseq
      %v1023 = vshrl.u32 %v1022, 7
      %v1024 = vsub.s32 7, %v1023
      %v1025 = vrot.slane %v504, %v1024
      %v1026 = vmul.f32 %v1019, %v1025
      %v1027 = vsel %vm768, %v1026, -inf
      %1028 = vmax.xlane.f32.xlu0 %v1027
      %v1029 = vpop.xlane.xlu0 %1028
      %vm1030 = vcmask 7168
      %v1031 = vsel %vm1030, %v771, %v857
      %vm1032 = vcmask 15360
      %v1033 = vsel %vm1032, %v1031, %v943
      %vm1034 = vcmask 23552
      %v1035 = vsel %vm1034, %v1033, %v1029
      %1037 = vrot.lane.b32.xlu0 %v410, 124
      %v1038 = vpop.permute.xlu0 %1037
      %v1040 = vmul.f32 %v1035, %v1038
      %v1041 = vsel %vm768, %v600, 0.0
      %1042 = vadd.xlane.f32.xlu0 %v1041
      %v1043 = vpop.xlane.xlu0 %1042
      %v1044 = vrcp.pop %v1043
      %v1046 = vsel %vm768, %v600, 0
      %1048 = vmatprep.subr.mxu0 0.0
      %1049 = vmatpush1.msra.mxu0 %v327
      %1050 = vmatprep.subr.mxu0 0.0
      %1051 = vmatpush1.msra.mxu0 0.0
      %1052 = vmatprep.subr.mxu0 0.0
      %1053 = vmatpush1.msra.mxu0 0.0
      %1054 = vmatprep.subr.mxu0 0.0
      %1055 = vmatpush1.msra.mxu0 0.0
      %1056 = vmatprep.subr.mxu0 0.0
      %1057 = vmatpush1.msra.mxu0 0.0
      %1058 = vmatprep.subr.mxu0 0.0
      %1059 = vmatpush1.msra.mxu0 0.0
      %1060 = vmatprep.subr.mxu0 0.0
      %1061 = vmatpush1.msra.mxu0 0.0
      %1062 = vmatprep.subr.mxu0 0.0
      %1063 = vmatpush1.msra.mxu0 0.0
      %1064 = vmatprep.subr.mxu0 0.0
      %1065 = vmatpush1.msra.mxu0 0.0
      %1066 = vmatprep.subr.mxu0 0.0
      %1067 = vmatpush1.msra.mxu0 0.0
      %1068 = vmatprep.subr.mxu0 0.0
      %1069 = vmatpush1.msra.mxu0 0.0
      %1070 = vmatprep.subr.mxu0 0.0
      %1071 = vmatpush1.msra.mxu0 0.0
      %1072 = vmatprep.subr.mxu0 0.0
      %1073 = vmatpush1.msra.mxu0 0.0
      %1074 = vmatprep.subr.mxu0 0.0
      %1075 = vmatpush1.msra.mxu0 0.0
      %1076 = vmatprep.subr.mxu0 0.0
      %1077 = vmatpush1.msra.mxu0 0.0
      %1078 = vmatprep.subr.mxu0 0.0
      %1079 = vmatpush1.msra.mxu0 0.0
      %1080 = vmatprep.subr.mxu0 0.0
      %1081 = vmatpush1.msra.mxu0 0.0
      %1082 = vmatprep.subr.mxu0 0.0
      %1083 = vmatpush1.msra.mxu0 0.0
      %1084 = vmatprep.subr.mxu0 0.0
      %1085 = vmatpush1.msra.mxu0 0.0
      %1086 = vmatprep.subr.mxu0 0.0
      %1087 = vmatpush1.msra.mxu0 0.0
      %1088 = vmatprep.subr.mxu0 0.0
      %1089 = vmatpush1.msra.mxu0 0.0
      %1090 = vmatprep.subr.mxu0 0.0
      %1091 = vmatpush1.msra.mxu0 0.0
      %1092 = vmatprep.subr.mxu0 0.0
      %1093 = vmatpush1.msra.mxu0 0.0
      %1094 = vmatprep.subr.mxu0 0.0
      %1095 = vmatpush1.msra.mxu0 0.0
      %1096 = vmatprep.subr.mxu0 0.0
      %1097 = vmatpush1.msra.mxu0 0.0
      %1098 = vmatprep.subr.mxu0 0.0
      %1099 = vmatpush1.msra.mxu0 0.0
      %1100 = vmatprep.subr.mxu0 0.0
      %1101 = vmatpush1.msra.mxu0 0.0
      %1102 = vmatprep.subr.mxu0 0.0
      %1103 = vmatpush1.msra.mxu0 0.0
      %1104 = vmatprep.subr.mxu0 0.0
      %1105 = vmatpush1.msra.mxu0 0.0
      %1106 = vmatprep.subr.mxu0 0.0
      %1107 = vmatpush1.msra.mxu0 0.0
      %1108 = vmatprep.subr.mxu0 0.0
      %1109 = vmatpush1.msra.mxu0 0.0
      %1110 = vmatprep.subr.mxu0 0.0
      %1111 = vmatpush1.msra.mxu0 0.0
      %1112 = vmatprep.mubr.f32.mxu0 0.0
      %1113 = vmatmul.mubr.f32.gmra.mrb[0].mxu0 %v1046
      %v1114 = vpop.f32.mrb[0].mxu0
      %v1115 = vadd.f32 0.0, %v1114
      %v1116 = vpop.f32.mrb[0].mxu0
      %1117 = vdwg.mxu0
      %v1118 = vmul.f32 %v1115, %v1044
      %v1119 = vmul.f32 %v326, %v1118
      %1124 = vrot.lane.b32.xlu0 %v329, 120
      %v1125 = vpop.permute.xlu0 %1124
      %1126 = vrot.lane.b32.xlu0 %v330, 120
      %v1127 = vpop.permute.xlu0 %1126
      %1128 = vrot.lane.b32.xlu0 %v331, 120
      %v1129 = vpop.permute.xlu0 %1128
      %1130 = vrot.lane.b32.xlu0 %v332, 120
      %v1131 = vpop.permute.xlu0 %1130
      %v1137 = vsel %vm334, %v1119, 0
      %1139 = vmatprep.subr.mxu0 0.0
      %1140 = vmatpush1.msra.mxu0 %v1125
      %1141 = vmatprep.subr.mxu0 0.0
      %1142 = vmatpush1.msra.mxu0 %v1127
      %1143 = vmatprep.subr.mxu0 0.0
      %1144 = vmatpush1.msra.mxu0 %v1129
      %1145 = vmatprep.subr.mxu0 0.0
      %1146 = vmatpush1.msra.mxu0 %v1131
      %1147 = vmatprep.subr.mxu0 0.0
      %1148 = vmatpush1.msra.mxu0 0.0
      %1149 = vmatprep.subr.mxu0 0.0
      %1150 = vmatpush1.msra.mxu0 0.0
      %1151 = vmatprep.subr.mxu0 0.0
      %1152 = vmatpush1.msra.mxu0 0.0
      %1153 = vmatprep.subr.mxu0 0.0
      %1154 = vmatpush1.msra.mxu0 0.0
      %1155 = vmatprep.subr.mxu0 0.0
      %1156 = vmatpush1.msra.mxu0 0.0
      %1157 = vmatprep.subr.mxu0 0.0
      %1158 = vmatpush1.msra.mxu0 0.0
      %1159 = vmatprep.subr.mxu0 0.0
      %1160 = vmatpush1.msra.mxu0 0.0
      %1161 = vmatprep.subr.mxu0 0.0
      %1162 = vmatpush1.msra.mxu0 0.0
      %1163 = vmatprep.subr.mxu0 0.0
      %1164 = vmatpush1.msra.mxu0 0.0
      %1165 = vmatprep.subr.mxu0 0.0
      %1166 = vmatpush1.msra.mxu0 0.0
      %1167 = vmatprep.subr.mxu0 0.0
      %1168 = vmatpush1.msra.mxu0 0.0
      %1169 = vmatprep.subr.mxu0 0.0
      %1170 = vmatpush1.msra.mxu0 0.0
      %1171 = vmatprep.subr.mxu0 0.0
      %1172 = vmatpush1.msra.mxu0 0.0
      %1173 = vmatprep.subr.mxu0 0.0
      %1174 = vmatpush1.msra.mxu0 0.0
      %1175 = vmatprep.subr.mxu0 0.0
      %1176 = vmatpush1.msra.mxu0 0.0
      %1177 = vmatprep.subr.mxu0 0.0
      %1178 = vmatpush1.msra.mxu0 0.0
      %1179 = vmatprep.subr.mxu0 0.0
      %1180 = vmatpush1.msra.mxu0 0.0
      %1181 = vmatprep.subr.mxu0 0.0
      %1182 = vmatpush1.msra.mxu0 0.0
      %1183 = vmatprep.subr.mxu0 0.0
      %1184 = vmatpush1.msra.mxu0 0.0
      %1185 = vmatprep.subr.mxu0 0.0
      %1186 = vmatpush1.msra.mxu0 0.0
      %1187 = vmatprep.subr.mxu0 0.0
      %1188 = vmatpush1.msra.mxu0 0.0
      %1189 = vmatprep.subr.mxu0 0.0
      %1190 = vmatpush1.msra.mxu0 0.0
      %1191 = vmatprep.subr.mxu0 0.0
      %1192 = vmatpush1.msra.mxu0 0.0
      %1193 = vmatprep.subr.mxu0 0.0
      %1194 = vmatpush1.msra.mxu0 0.0
      %1195 = vmatprep.subr.mxu0 0.0
      %1196 = vmatpush1.msra.mxu0 0.0
      %1197 = vmatprep.subr.mxu0 0.0
      %1198 = vmatpush1.msra.mxu0 0.0
      %1199 = vmatprep.subr.mxu0 0.0
      %1200 = vmatpush1.msra.mxu0 0.0
      %1201 = vmatprep.subr.mxu0 0.0
      %1202 = vmatpush1.msra.mxu0 0.0
      %1203 = vmatprep.mubr.f32.mxu0 0.0
      %1204 = vmatmul.mubr.f32.gmra.mrb[0].mxu0 %v1137
      %v1205 = vpop.f32.mrb[0].mxu0
      %v1206 = vadd.f32 0.0, %v1205
      %v1207 = vpop.f32.mrb[0].mxu0
      %1208 = vdwg.mxu0
      %1209 = vrot.lane.b32.xlu0 %v410, 120
      %v1210 = vpop.permute.xlu0 %1209
      %v1212 = vmul.f32 %v1206, %v1210
      %v1213 = vmul.f32 %v1118, %v1118
      %v1215 = vsel %vm334, %v1213, 0
      %1217 = vmatprep.subr.mxu0 0.0
      %1218 = vmatpush1.msra.mxu0 %v1125
      %1219 = vmatprep.subr.mxu0 0.0
      %1220 = vmatpush1.msra.mxu0 %v1127
      %1221 = vmatprep.subr.mxu0 0.0
      %1222 = vmatpush1.msra.mxu0 %v1129
      %1223 = vmatprep.subr.mxu0 0.0
      %1224 = vmatpush1.msra.mxu0 %v1131
      %1225 = vmatprep.subr.mxu0 0.0
      %1226 = vmatpush1.msra.mxu0 0.0
      %1227 = vmatprep.subr.mxu0 0.0
      %1228 = vmatpush1.msra.mxu0 0.0
      %1229 = vmatprep.subr.mxu0 0.0
      %1230 = vmatpush1.msra.mxu0 0.0
      %1231 = vmatprep.subr.mxu0 0.0
      %1232 = vmatpush1.msra.mxu0 0.0
      %1233 = vmatprep.subr.mxu0 0.0
      %1234 = vmatpush1.msra.mxu0 0.0
      %1235 = vmatprep.subr.mxu0 0.0
      %1236 = vmatpush1.msra.mxu0 0.0
      %1237 = vmatprep.subr.mxu0 0.0
      %1238 = vmatpush1.msra.mxu0 0.0
      %1239 = vmatprep.subr.mxu0 0.0
      %1240 = vmatpush1.msra.mxu0 0.0
      %1241 = vmatprep.subr.mxu0 0.0
      %1242 = vmatpush1.msra.mxu0 0.0
      %1243 = vmatprep.subr.mxu0 0.0
      %1244 = vmatpush1.msra.mxu0 0.0
      %1245 = vmatprep.subr.mxu0 0.0
      %1246 = vmatpush1.msra.mxu0 0.0
      %1247 = vmatprep.subr.mxu0 0.0
      %1248 = vmatpush1.msra.mxu0 0.0
      %1249 = vmatprep.subr.mxu0 0.0
      %1250 = vmatpush1.msra.mxu0 0.0
      %1251 = vmatprep.subr.mxu0 0.0
      %1252 = vmatpush1.msra.mxu0 0.0
      %1253 = vmatprep.subr.mxu0 0.0
      %1254 = vmatpush1.msra.mxu0 0.0
      %1255 = vmatprep.subr.mxu0 0.0
      %1256 = vmatpush1.msra.mxu0 0.0
      %1257 = vmatprep.subr.mxu0 0.0
      %1258 = vmatpush1.msra.mxu0 0.0
      %1259 = vmatprep.subr.mxu0 0.0
      %1260 = vmatpush1.msra.mxu0 0.0
      %1261 = vmatprep.subr.mxu0 0.0
      %1262 = vmatpush1.msra.mxu0 0.0
      %1263 = vmatprep.subr.mxu0 0.0
      %1264 = vmatpush1.msra.mxu0 0.0
      %1265 = vmatprep.subr.mxu0 0.0
      %1266 = vmatpush1.msra.mxu0 0.0
      %1267 = vmatprep.subr.mxu0 0.0
      %1268 = vmatpush1.msra.mxu0 0.0
      %1269 = vmatprep.subr.mxu0 0.0
      %1270 = vmatpush1.msra.mxu0 0.0
      %1271 = vmatprep.subr.mxu0 0.0
      %1272 = vmatpush1.msra.mxu0 0.0
      %1273 = vmatprep.subr.mxu0 0.0
      %1274 = vmatpush1.msra.mxu0 0.0
      %1275 = vmatprep.subr.mxu0 0.0
      %1276 = vmatpush1.msra.mxu0 0.0
      %1277 = vmatprep.subr.mxu0 0.0
      %1278 = vmatpush1.msra.mxu0 0.0
      %1279 = vmatprep.subr.mxu0 0.0
      %1280 = vmatpush1.msra.mxu0 0.0
      %1281 = vmatprep.mubr.f32.mxu0 0.0
      %1282 = vmatmul.mubr.f32.gmra.mrb[0].mxu0 %v1215
      %v1283 = vpop.f32.mrb[0].mxu0
      %v1284 = vadd.f32 0.0, %v1283
      %v1285 = vpop.f32.mrb[0].mxu0
      %1286 = vdwg.mxu0
      %v1287 = vmax.f32 %v1284, 0.0
      %v1288 = vrsqrt.pop %v1287
      %v1289 = vmin.f32 %v1288, 1e+08
      %v1290 = vmul.f32 %v1212, %v1289
      %v1291 = vlaneseq
      %v1292 = vand.u32 %v1291, 127
      %v1293 = vsel %vm768, %v600, -inf
      %1294 = vmax.xlane.f32.xlu0 %v1293
      %v1295 = vpop.xlane.xlu0 %1294
      %vm1296 = vcmp.ge.f32.partialorder %v600, %v1295
      %v1297 = vsel %vm1296, %v1292, 8
      %v1298 = vsel %vm768, %v1297, 2147483647
      %v1299 = vand.u32 %v1298, 65535
      %v1300 = vshra.s32 %v1298, 16
      %v1301 = vcvt.s32.f32 %v1299
      %v1302 = vcvt.s32.f32 %v1300
      %1303 = vmin.xlane.f32.xlu0 %v1302
      %v1304 = vpop.xlane.xlu0 %1303
      %vm1305 = vcmp.eq.f32.partialorder %v1302, %v1304
      %v1306 = vsel %vm1305, %v1301, inf
      %1307 = vmin.xlane.f32.xlu0 %v1306
      %v1308 = vpop.xlane.xlu0 %1307
      %v1309 = vcvt.f32.s32 %v1308
      %v1310 = vcvt.f32.s32 %v1304
      %v1311 = vshll.u32 %v1310, 16
      %v1312 = vadd.s32 %v1311, %v1309
      %vm1313 = vcmp.eq.s32.totalorder %v1292, %v1312
      %v1314 = vsel %vm1313, 1, 0
      %v1315 = vcvt.s32.f32 %v1314
      %v1317 = vsel %vm768, %v1315, 0
      %1319 = vmatprep.subr.mxu0 0.0
      %1320 = vmatpush1.msra.mxu0 %v327
      %1321 = vmatprep.subr.mxu0 0.0
      %1322 = vmatpush1.msra.mxu0 0.0
      %1323 = vmatprep.subr.mxu0 0.0
      %1324 = vmatpush1.msra.mxu0 0.0
      %1325 = vmatprep.subr.mxu0 0.0
      %1326 = vmatpush1.msra.mxu0 0.0
      %1327 = vmatprep.subr.mxu0 0.0
      %1328 = vmatpush1.msra.mxu0 0.0
      %1329 = vmatprep.subr.mxu0 0.0
      %1330 = vmatpush1.msra.mxu0 0.0
      %1331 = vmatprep.subr.mxu0 0.0
      %1332 = vmatpush1.msra.mxu0 0.0
      %1333 = vmatprep.subr.mxu0 0.0
      %1334 = vmatpush1.msra.mxu0 0.0
      %1335 = vmatprep.subr.mxu0 0.0
      %1336 = vmatpush1.msra.mxu0 0.0
      %1337 = vmatprep.subr.mxu0 0.0
      %1338 = vmatpush1.msra.mxu0 0.0
      %1339 = vmatprep.subr.mxu0 0.0
      %1340 = vmatpush1.msra.mxu0 0.0
      %1341 = vmatprep.subr.mxu0 0.0
      %1342 = vmatpush1.msra.mxu0 0.0
      %1343 = vmatprep.subr.mxu0 0.0
      %1344 = vmatpush1.msra.mxu0 0.0
      %1345 = vmatprep.subr.mxu0 0.0
      %1346 = vmatpush1.msra.mxu0 0.0
      %1347 = vmatprep.subr.mxu0 0.0
      %1348 = vmatpush1.msra.mxu0 0.0
      %1349 = vmatprep.subr.mxu0 0.0
      %1350 = vmatpush1.msra.mxu0 0.0
      %1351 = vmatprep.subr.mxu0 0.0
      %1352 = vmatpush1.msra.mxu0 0.0
      %1353 = vmatprep.subr.mxu0 0.0
      %1354 = vmatpush1.msra.mxu0 0.0
      %1355 = vmatprep.subr.mxu0 0.0
      %1356 = vmatpush1.msra.mxu0 0.0
      %1357 = vmatprep.subr.mxu0 0.0
      %1358 = vmatpush1.msra.mxu0 0.0
      %1359 = vmatprep.subr.mxu0 0.0
      %1360 = vmatpush1.msra.mxu0 0.0
      %1361 = vmatprep.subr.mxu0 0.0
      %1362 = vmatpush1.msra.mxu0 0.0
      %1363 = vmatprep.subr.mxu0 0.0
      %1364 = vmatpush1.msra.mxu0 0.0
      %1365 = vmatprep.subr.mxu0 0.0
      %1366 = vmatpush1.msra.mxu0 0.0
      %1367 = vmatprep.subr.mxu0 0.0
      %1368 = vmatpush1.msra.mxu0 0.0
      %1369 = vmatprep.subr.mxu0 0.0
      %1370 = vmatpush1.msra.mxu0 0.0
      %1371 = vmatprep.subr.mxu0 0.0
      %1372 = vmatpush1.msra.mxu0 0.0
      %1373 = vmatprep.subr.mxu0 0.0
      %1374 = vmatpush1.msra.mxu0 0.0
      %1375 = vmatprep.subr.mxu0 0.0
      %1376 = vmatpush1.msra.mxu0 0.0
      %1377 = vmatprep.subr.mxu0 0.0
      %1378 = vmatpush1.msra.mxu0 0.0
      %1379 = vmatprep.subr.mxu0 0.0
      %1380 = vmatpush1.msra.mxu0 0.0
      %1381 = vmatprep.subr.mxu0 0.0
      %1382 = vmatpush1.msra.mxu0 0.0
      %1383 = vmatprep.mubr.f32.mxu0 0.0
      %1384 = vmatmul.mubr.f32.gmra.mrb[0].mxu0 %v1317
      %v1385 = vpop.f32.mrb[0].mxu0
      %v1386 = vadd.f32 0.0, %v1385
      %v1387 = vpop.f32.mrb[0].mxu0
      %1388 = vdwg.mxu0
      %1390 = vrot.lane.b32.xlu0 %v487, 116
      %v1391 = vpop.permute.xlu0 %1390
      %1393 = vmatprep.subr.mxu0 0.0
      %1394 = vmatpush1.msra.mxu0 %v1391
      %1395 = vmatprep.subr.mxu0 0.0
      %1396 = vmatpush1.msra.mxu0 0.0
      %1397 = vmatprep.subr.mxu0 0.0
      %1398 = vmatpush1.msra.mxu0 0.0
      %1399 = vmatprep.subr.mxu0 0.0
      %1400 = vmatpush1.msra.mxu0 0.0
      %1401 = vmatprep.subr.mxu0 0.0
      %1402 = vmatpush1.msra.mxu0 0.0
      %1403 = vmatprep.subr.mxu0 0.0
      %1404 = vmatpush1.msra.mxu0 0.0
      %1405 = vmatprep.subr.mxu0 0.0
      %1406 = vmatpush1.msra.mxu0 0.0
      %1407 = vmatprep.subr.mxu0 0.0
      %1408 = vmatpush1.msra.mxu0 0.0
      %1409 = vmatprep.subr.mxu0 0.0
      %1410 = vmatpush1.msra.mxu0 0.0
      %1411 = vmatprep.subr.mxu0 0.0
      %1412 = vmatpush1.msra.mxu0 0.0
      %1413 = vmatprep.subr.mxu0 0.0
      %1414 = vmatpush1.msra.mxu0 0.0
      %1415 = vmatprep.subr.mxu0 0.0
      %1416 = vmatpush1.msra.mxu0 0.0
      %1417 = vmatprep.subr.mxu0 0.0
      %1418 = vmatpush1.msra.mxu0 0.0
      %1419 = vmatprep.subr.mxu0 0.0
      %1420 = vmatpush1.msra.mxu0 0.0
      %1421 = vmatprep.subr.mxu0 0.0
      %1422 = vmatpush1.msra.mxu0 0.0
      %1423 = vmatprep.subr.mxu0 0.0
      %1424 = vmatpush1.msra.mxu0 0.0
      %1425 = vmatprep.subr.mxu0 0.0
      %1426 = vmatpush1.msra.mxu0 0.0
      %1427 = vmatprep.subr.mxu0 0.0
      %1428 = vmatpush1.msra.mxu0 0.0
      %1429 = vmatprep.subr.mxu0 0.0
      %1430 = vmatpush1.msra.mxu0 0.0
      %1431 = vmatprep.subr.mxu0 0.0
      %1432 = vmatpush1.msra.mxu0 0.0
      %1433 = vmatprep.subr.mxu0 0.0
      %1434 = vmatpush1.msra.mxu0 0.0
      %1435 = vmatprep.subr.mxu0 0.0
      %1436 = vmatpush1.msra.mxu0 0.0
      %1437 = vmatprep.subr.mxu0 0.0
      %1438 = vmatpush1.msra.mxu0 0.0
      %1439 = vmatprep.subr.mxu0 0.0
      %1440 = vmatpush1.msra.mxu0 0.0
      %1441 = vmatprep.subr.mxu0 0.0
      %1442 = vmatpush1.msra.mxu0 0.0
      %1443 = vmatprep.subr.mxu0 0.0
      %1444 = vmatpush1.msra.mxu0 0.0
      %1445 = vmatprep.subr.mxu0 0.0
      %1446 = vmatpush1.msra.mxu0 0.0
      %1447 = vmatprep.subr.mxu0 0.0
      %1448 = vmatpush1.msra.mxu0 0.0
      %1449 = vmatprep.subr.mxu0 0.0
      %1450 = vmatpush1.msra.mxu0 0.0
      %1451 = vmatprep.subr.mxu0 0.0
      %1452 = vmatpush1.msra.mxu0 0.0
      %1453 = vmatprep.subr.mxu0 0.0
      %1454 = vmatpush1.msra.mxu0 0.0
      %1455 = vmatprep.subr.mxu0 0.0
      %1456 = vmatpush1.msra.mxu0 0.0
      %1457 = vmatprep.mubr.f32.mxu0 0.0
      %1458 = vmatmul.mubr.f32.gmra.mrb[0].mxu0 %v1317
      %v1459 = vpop.f32.mrb[0].mxu0
      %v1460 = vadd.f32 0.0, %v1459
      %v1461 = vpop.f32.mrb[0].mxu0
      %1462 = vdwg.mxu0
      %v1463 = vmul.f32 %v326, %v1386
      %1464 = vrot.lane.b32.xlu0 %v329, 116
      %v1465 = vpop.permute.xlu0 %1464
      %1466 = vrot.lane.b32.xlu0 %v330, 116
      %v1467 = vpop.permute.xlu0 %1466
      %1468 = vrot.lane.b32.xlu0 %v331, 116
      %v1469 = vpop.permute.xlu0 %1468
      %1470 = vrot.lane.b32.xlu0 %v332, 116
      %v1471 = vpop.permute.xlu0 %1470
      %v1477 = vsel %vm334, %v1463, 0
      %1479 = vmatprep.subr.mxu0 0.0
      %1480 = vmatpush1.msra.mxu0 %v1465
      %1481 = vmatprep.subr.mxu0 0.0
      %1482 = vmatpush1.msra.mxu0 %v1467
      %1483 = vmatprep.subr.mxu0 0.0
      %1484 = vmatpush1.msra.mxu0 %v1469
      %1485 = vmatprep.subr.mxu0 0.0
      %1486 = vmatpush1.msra.mxu0 %v1471
      %1487 = vmatprep.subr.mxu0 0.0
      %1488 = vmatpush1.msra.mxu0 0.0
      %1489 = vmatprep.subr.mxu0 0.0
      %1490 = vmatpush1.msra.mxu0 0.0
      %1491 = vmatprep.subr.mxu0 0.0
      %1492 = vmatpush1.msra.mxu0 0.0
      %1493 = vmatprep.subr.mxu0 0.0
      %1494 = vmatpush1.msra.mxu0 0.0
      %1495 = vmatprep.subr.mxu0 0.0
      %1496 = vmatpush1.msra.mxu0 0.0
      %1497 = vmatprep.subr.mxu0 0.0
      %1498 = vmatpush1.msra.mxu0 0.0
      %1499 = vmatprep.subr.mxu0 0.0
      %1500 = vmatpush1.msra.mxu0 0.0
      %1501 = vmatprep.subr.mxu0 0.0
      %1502 = vmatpush1.msra.mxu0 0.0
      %1503 = vmatprep.subr.mxu0 0.0
      %1504 = vmatpush1.msra.mxu0 0.0
      %1505 = vmatprep.subr.mxu0 0.0
      %1506 = vmatpush1.msra.mxu0 0.0
      %1507 = vmatprep.subr.mxu0 0.0
      %1508 = vmatpush1.msra.mxu0 0.0
      %1509 = vmatprep.subr.mxu0 0.0
      %1510 = vmatpush1.msra.mxu0 0.0
      %1511 = vmatprep.subr.mxu0 0.0
      %1512 = vmatpush1.msra.mxu0 0.0
      %1513 = vmatprep.subr.mxu0 0.0
      %1514 = vmatpush1.msra.mxu0 0.0
      %1515 = vmatprep.subr.mxu0 0.0
      %1516 = vmatpush1.msra.mxu0 0.0
      %1517 = vmatprep.subr.mxu0 0.0
      %1518 = vmatpush1.msra.mxu0 0.0
      %1519 = vmatprep.subr.mxu0 0.0
      %1520 = vmatpush1.msra.mxu0 0.0
      %1521 = vmatprep.subr.mxu0 0.0
      %1522 = vmatpush1.msra.mxu0 0.0
      %1523 = vmatprep.subr.mxu0 0.0
      %1524 = vmatpush1.msra.mxu0 0.0
      %1525 = vmatprep.subr.mxu0 0.0
      %1526 = vmatpush1.msra.mxu0 0.0
      %1527 = vmatprep.subr.mxu0 0.0
      %1528 = vmatpush1.msra.mxu0 0.0
      %1529 = vmatprep.subr.mxu0 0.0
      %1530 = vmatpush1.msra.mxu0 0.0
      %1531 = vmatprep.subr.mxu0 0.0
      %1532 = vmatpush1.msra.mxu0 0.0
      %1533 = vmatprep.subr.mxu0 0.0
      %1534 = vmatpush1.msra.mxu0 0.0
      %1535 = vmatprep.subr.mxu0 0.0
      %1536 = vmatpush1.msra.mxu0 0.0
      %1537 = vmatprep.subr.mxu0 0.0
      %1538 = vmatpush1.msra.mxu0 0.0
      %1539 = vmatprep.subr.mxu0 0.0
      %1540 = vmatpush1.msra.mxu0 0.0
      %1541 = vmatprep.subr.mxu0 0.0
      %1542 = vmatpush1.msra.mxu0 0.0
      %1543 = vmatprep.mubr.f32.mxu0 0.0
      %1544 = vmatmul.mubr.f32.gmra.mrb[0].mxu0 %v1477
      %v1545 = vpop.f32.mrb[0].mxu0
      %v1546 = vadd.f32 0.0, %v1545
      %v1547 = vpop.f32.mrb[0].mxu0
      %1548 = vdwg.mxu0
      %1549 = vrot.lane.b32.xlu0 %v410, 116
      %v1550 = vpop.permute.xlu0 %1549
      %v1552 = vmul.f32 %v1546, %v1550
      %v1553 = vmul.f32 %v1552, %v1460
      %1555 = vrot.lane.b32.xlu0 %v1040, 4
      %v1556 = vpop.permute.xlu0 %1555
      %1559 = vrot.lane.b32.xlu0 %v1290, 8
      %v1560 = vpop.permute.xlu0 %1559
      %1563 = vrot.lane.b32.xlu0 %v1553, 12
      %v1564 = vpop.permute.xlu0 %1563
      %vm1566 = vcmask 31744
      %v1567 = vsel %vm1566, %v684, %v1556
      %v1568 = vsel %vm768, %v1567, %v1560
      %vm1569 = vcmask 97280
      %v1570 = vsel %vm1569, %v1568, %v1564
      %vm1571 = vcmask 130048
      %v1572 = vsel %vm1571, %v1570, 0.0
      %1573 = vst [vmem:[%s325] sm:$0xff] %v1572
      %p1574 = scmp.lt.s32.totalorder %s20, 1
      %s1575 = scalar_select %p1574, %s20, 1
      %p1576 = scmp.lt.s32.totalorder %s21, 1
      %s1577 = scalar_select %p1576, %s21, 1
      %p1578 = scmp.lt.s32.totalorder %s22, 0
      %s1579 = scalar_select %p1578, %s22, 0
      %s1580 = sadd.s32 %s1579, %s1577
      %s1581 = smul.addr %s1575, 2
      %s1582 = sadd.s32 %s1580, %s1581
      %s1583 = smul.addr %s1582, 8
      %s1584 = scalar_lea.vmem %s4, %s1583
      // Predicated region
      $region37: #{multi_perspective.1} parent=35 // pred_check
        %p1585 = pneg %p166
      $region38: #{multi_perspective.1} parent=35 // pred_check_branch
        %1587 = sbr.rel (%p1585) target = $region40
      $region39: #{multi_perspective.1} parent=35 // pred_region
        _
      $region40: #{multi_perspective.1} parent=35 // pred_fallthru
        _
    $region36: #{multi_perspective.1} parent=5 // pred_fallthru
      _
    %p1588 = scmp.le.s32.totalorder 2, %s10
    // Predicated region
    $region41: #{multi_perspective.1} parent=5 // pred_check
      %p1589 = pneg %p1588
    $region42: #{multi_perspective.1} parent=5 // pred_check_branch
      %1591 = sbr.rel (%p1589) target = $region44
    $region43: #{multi_perspective.1} parent=5 // pred_region
      %s1592 = ssub.s32 %s10, 2
      // Predicated region
      $region45: #{multi_perspective.1} parent=43 // pred_check
        %p1593 = pneg %p172
      $region46: #{multi_perspective.1} parent=43 // pred_check_branch
        %1595 = sbr.rel (%p1593) target = $region48
      $region47: #{multi_perspective.1} parent=43 // pred_region
        %p1596 = scmp.lt.s32.totalorder %s23, 1
        %s1597 = scalar_select %p1596, %s23, 1
        %p1598 = scmp.lt.s32.totalorder %s24, 1
        %s1599 = scalar_select %p1598, %s24, 1
        %p1600 = scmp.lt.s32.totalorder %s25, 0
        %s1601 = scalar_select %p1600, %s25, 0
        %s1602 = sadd.s32 %s1601, %s1599
        %s1603 = smul.addr %s1597, 2
        %s1604 = sadd.s32 %s1602, %s1603
        %s1605 = smul.addr %s1604, 8
        %s1606 = scalar_lea.vmem %s4, %s1605
      $region48: #{multi_perspective.1} parent=43 // pred_fallthru
        _
    $region44: #{multi_perspective.1} parent=5 // pred_fallthru
      _
  $region6: #{multi_perspective.1} parent=0 // loop_footer
    %s14 = sadd.s32 1, %s10
  $region7: #{multi_perspective.1} parent=0 // loop_footer_branch
    %9 = sbr.rel target = $region3
  $region8: #{multi_perspective.1} parent=0 // loop_exit
    _

</llo_original>
